<compile_context>
chip_gen: v6e
topology: v6e:2x2x1
jax: 0.10.0
libtpu: 0.0.40
codegen_flags: <defaults>
</compile_context>

<pallas_src>
import jax
import jax.numpy as jnp
from jax import lax
from jax.experimental import pallas as pl
from jax.experimental.pallas import tpu as pltpu


# --------------------------------------------------------------------------- #
# Kernel
# --------------------------------------------------------------------------- #
def _make_stage_kernel(Cc, Wp, Lblk):
    """Subpixel decoder-stage kernel.

    xcur_ref : (1, 1, Cc, Lblk)  bf16  flattened padded coarse rows of block rb
    xnxt_ref : (1, 1, Cc, Lblk)  bf16  same, block rb+1 (2-row halo source)
    w_ref    : (4*Cout, 9*Cc)    bf16  folded subpixel weights
    shift_ref: (4*Cout, 1)       f32   folded BN shift / bias
    o_ref    : (1, 1, 4*Cout, Lblk) bf16  4 parity planes, lane-dense
    col_ref  : (9*Cc, Lblk)      bf16  VMEM im2col scratch
    """

    def kernel(xcur_ref, xnxt_ref, w_ref, shift_ref, o_ref, col_ref):
        # im2col of the coarse padded image: tap (r, c) is a static lane-offset
        # slice at s = r*Wp + c of the flattened image; the last s lanes of the
        # row block spill into the next block view (halo).
        for t in range(9):
            r, c = divmod(t, 3)
            s = r * Wp + c
            if s == 0:
                col_ref[pl.ds(t * Cc, Cc), :] = xcur_ref[0, 0]
            else:
                col_ref[pl.ds(t * Cc, Cc), pl.ds(0, Lblk - s)] = (
                    xcur_ref[0, 0, :, pl.ds(s, Lblk - s)])
                col_ref[pl.ds(t * Cc, Cc), pl.ds(Lblk - s, s)] = (
                    xnxt_ref[0, 0, :, pl.ds(0, s)])

        # Single MXU matmul, M = 4*Cout parity-channel rows, K = 9*Cc,
        # bf16 operands, f32 accumulation.
        y = jnp.dot(w_ref[...], col_ref[...],
                    preferred_element_type=jnp.float32)
        y = y + shift_ref[...]                      # fused BN shift (+ bias)
        o_ref[0, 0] = jnp.maximum(y, 0.0).astype(o_ref.dtype)   # ReLU

    return kernel


# --------------------------------------------------------------------------- #
# Weight folding (wrapper-side, f32, then cast to bf16)
# --------------------------------------------------------------------------- #
def _fold_stage_weights(p, cin, cadd):
    """Fold upsample(2,2) + 3x3 conv + BN scale + 1x1 residual (+ add-map
    channels) into subpixel coarse-tap weights: (4*Cout, 9*Cc) with
    Cc = cin + 4*cadd."""
    w = p["w"].astype(jnp.float32)                  # (3, 3, cin+cadd, cout)
    KH, KW, cin_tot, cout = w.shape
    assert (KH, KW) == (3, 3), "TODO(synk): only 3x3 kernels are folded"
    assert cin_tot == cin + cadd
    cc = cin + 4 * cadd
    ws = w * p["scale"].astype(jnp.float32)         # BN scale into conv taps
    wres = p["wres"].astype(jnp.float32)            # (cin_tot, cout)

    wf = jnp.zeros((2, 2, 3, 3, cc, cout), jnp.float32)
    for a in range(2):                              # output row parity
        for b in range(2):                          # output col parity
            for kh in range(3):
                for kw in range(3):
                    drf, dcf = a + kh - 1, b + kw - 1      # fine-grid offsets
                    r, c = drf // 2 + 1, dcf // 2 + 1      # coarse tap index
                    # upsampled-x channels: taps collapse onto coarse pixels
                    wf = wf.at[a, b, r, c, :cin, :].add(ws[kh, kw, :cin, :])
                    if cadd:
                        # add-map channels: pick the right parity plane
                        g = cin + ((drf % 2) * 2 + (dcf % 2)) * cadd
                        wf = wf.at[a, b, r, c, g:g + cadd, :].add(
                            ws[kh, kw, cin:, :])
            # 1x1 residual projection -> center coarse tap (unscaled by BN)
            wf = wf.at[a, b, 1, 1, :cin, :].add(wres[:cin])
            if cadd:
                g = cin + (a * 2 + b) * cadd
                wf = wf.at[a, b, 1, 1, g:g + cadd, :].add(wres[cin:])

    wmat = jnp.transpose(wf, (0, 1, 5, 2, 3, 4)).reshape(4 * cout, 9 * cc)
    shift = jnp.tile(p["shift"].astype(jnp.float32).reshape(1, cout), (4, 1))
    return wmat.astype(jnp.bfloat16), shift.reshape(4 * cout, 1)


# --------------------------------------------------------------------------- #
# One decoder stage
# --------------------------------------------------------------------------- #
def _stage(x, p, add=None):
    """x: (N, Cin, H, W) coarse input -> (N, Cout, 2H, 2W)."""
    N, Cin, H, W = x.shape
    cin_tot, Cout = p["w"].shape[2], p["w"].shape[3]
    Cadd = cin_tot - Cin
    assert Cadd >= 0
    if Cadd:
        assert add is not None and add.shape == (N, Cadd, 2 * H, 2 * W)
    else:
        add = None

    wmat, shift = _fold_stage_weights(p, Cin, Cadd)
    Cc = Cin + 4 * Cadd
    Cout4 = 4 * Cout

    # Coarse input (+ de-interleaved parity planes of the add map), bf16.
    xs = [x.astype(jnp.bfloat16)]
    if Cadd:
        a16 = add.astype(jnp.bfloat16)
        xs += [a16[:, :, pa::2, pb::2] for pa in range(2) for pb in range(2)]
    xc = jnp.concatenate(xs, axis=1) if len(xs) > 1 else xs[0]   # (N,Cc,H,W)

    # Row-block tiling: grid axis over output row blocks; halo comes from the
    # "next" block view.  TODO(synk): grow rows_blk toward the VMEM budget for
    # large images; optionally merge the batch into one step on v5e/v6e.
    rows_blk = 8 if (H % 8 == 0) else H
    assert rows_blk >= 3
    RB = H // rows_blk
    RBp = RB + 1                       # one extra all-zero row block (halo)
    Wp = W + 2
    Lblk = rows_blk * Wp
    Hp = RBp * rows_blk                # >= H + 3

    # Zero pad (1 top / 1 left / 1 right, zeros below) and lay out as
    # (N, row-block, Cc, rows_blk*Wp): every block's last two dims equal the
    # full array dims -> lane-dense, static in-kernel slicing only.
    xp = jnp.pad(xc, ((0, 0), (0, 0), (1, Hp - H - 1), (1, 1)))
    xb = xp.reshape(N, Cc, RBp, rows_blk, Wp).transpose(0, 2, 1, 3, 4)
    xb = xb.reshape(N, RBp, Cc, Lblk)

    flops = 2 * N * RB * Cout4 * (9 * Cc) * Lblk
    bytes_accessed = (2 * xb.size * 2 + wmat.size * 2 + shift.size * 4
                      + N * RB * Cout4 * Lblk * 2)
    # per-step footprint: 2 double-buffered input views + weights + shift +
    # double-buffered output block + col scratch
    vmem_bytes = (4 * Cc * Lblk * 2 + 2 * Cout4 * 9 * Cc * 2 + 2 * Cout4 * 4
                  + 2 * Cout4 * Lblk * 2 + 9 * Cc * Lblk * 2)
    vmem_limit = int(min(64 << 20, max(8 << 20, 3 * vmem_bytes)))

    yb = pl.pallas_call(
        _make_stage_kernel(Cc, Wp, Lblk),
        out_shape=jax.ShapeDtypeStruct((N, RB, Cout4, Lblk), jnp.bfloat16),
        grid=(N, RB),
        in_specs=[
            pl.BlockSpec((1, 1, Cc, Lblk), lambda n, rb: (n, rb, 0, 0)),
            pl.BlockSpec((1, 1, Cc, Lblk), lambda n, rb: (n, rb + 1, 0, 0)),
            pl.BlockSpec((Cout4, 9 * Cc), lambda n, rb: (0, 0)),
            pl.BlockSpec((Cout4, 1), lambda n, rb: (0, 0)),
        ],
        out_specs=pl.BlockSpec((1, 1, Cout4, Lblk), lambda n, rb: (n, rb, 0, 0)),
        scratch_shapes=[pltpu.VMEM((9 * Cc, Lblk), jnp.bfloat16)],
        compiler_params=pltpu.CompilerParams(
            dimension_semantics=("parallel", "parallel"),
            vmem_limit_bytes=vmem_limit),
        cost_estimate=pl.CostEstimate(flops=flops, transcendentals=0,
                                      bytes_accessed=bytes_accessed),
    )(xb, xb, wmat, shift)

    # Assemble parity planes -> (N, Cout, 2H, 2W): trim the 2 junk pad columns
    # and interleave rows/cols (single XLA pass; subsumes rev 2's trim pass).
    y = yb.reshape(N, RB, 2, 2, Cout, rows_blk, Wp)[..., :W]
    y = jnp.transpose(y, (0, 4, 1, 5, 2, 6, 3))
    return y.reshape(N, Cout, 2 * H, 2 * W)


def convolutional_decoder(x_nchw, params, upsampling=(2, 2), add_maps=None):
    """Forward pass: (N, Cin, Hin, Win) -> (N, Cout, Hout, Wout)."""
    assert tuple(upsampling) == (2, 2), \
        "TODO(synk): only nearest x2 upsampling is folded into the kernel"
    x = x_nchw
    adds = list(add_maps) if add_maps is not None else [None] * len(params)
    for p, add in zip(params, adds):
        x = _stage(x, p, add)
    return x.astype(jnp.float32)


# --------------------------------------------------------------------------- #
# Pure-JAX reference (unfolded weights, explicit upsample/concat, f32)
# --------------------------------------------------------------------------- #
def _ref_stage(x, p, add=None):
    xu = jnp.repeat(jnp.repeat(x, 2, axis=2), 2, axis=3)
    if add is not None:
        xu = jnp.concatenate([xu, add], axis=1)
    dn = ("NCHW", "HWIO", "NCHW")
    conv = lax.conv_general_dilated(xu, p["w"], (1, 1), "SAME",
                                    dimension_numbers=dn)
    short = lax.conv_general_dilated(xu, p["wres"][None, None], (1, 1), "SAME",
                                     dimension_numbers=dn)
    return jnp.maximum(conv * p["scale"][None, :, None, None]
                       + p["shift"][None, :, None, None] + short, 0.0)


if __name__ == "__main__":
    key = jax.random.PRNGKey(0)
    N, Cin0, H0, W0 = 2, 4, 16, 16
    features = [8, 4]            # two decoder stages: 4 -> 8 -> 4 channels
    add_feats = [2, 0]           # stage 1 gets a 2-channel add map, stage 2 none
    eps = 1e-5

    key, kx = jax.random.split(key)
    x_nchw = jax.random.normal(kx, (N, Cin0, H0, W0), jnp.float32)

    # deterministic synthetic parameters (no checkpoint loading)
    params, adds = [], []
    cin, h, w = Cin0, H0, W0
    for cout, cadd in zip(features, add_feats):
        h, w = 2 * h, 2 * w
        cin_tot = cin + cadd
        key, kw_, kb_, kr_, ka_ = jax.random.split(key, 5)
        wgt = 0.1 * jax.random.normal(kw_, (3, 3, cin_tot, cout), jnp.float32)
        b = 0.1 * jax.random.normal(kb_, (cout,), jnp.float32)
        wres = 0.1 * jax.random.normal(kr_, (cin_tot, cout), jnp.float32)
        # BatchNorm2d at PyTorch init, eval mode: gamma=1, beta=0, mean=0, var=1
        s = jnp.ones((cout,), jnp.float32) / jnp.sqrt(
            jnp.ones((cout,), jnp.float32) + eps)
        params.append(dict(w=wgt, scale=s,
                           shift=(b - jnp.zeros((cout,))) * s, wres=wres))
        adds.append(jax.random.normal(ka_, (N, cadd, h, w), jnp.float32)
                    if cadd else None)
        cin = cout

    fwd = jax.jit(lambda xx, ps, am: convolutional_decoder(xx, ps,
                                                           add_maps=am))
    out = jax.block_until_ready(fwd(x_nchw, params, adds))

    ref = x_nchw
    for p, add in zip(params, adds):
        ref = _ref_stage(ref, p, add)

    expected_shape = (N, features[-1], H0 * 4, W0 * 4)
    assert out.shape == expected_shape, (out.shape, expected_shape)
    # bf16 operands (review item #2) -> loosened tolerance vs f32 reference.
    assert jnp.allclose(out, ref, atol=4e-2, rtol=4e-2), \
        float(jnp.abs(out - ref).max())
    print("KERNEL_OK")
</pallas_src>

<mosaic_0001>
module attributes {stable_mosaic.version = 11 : i64} {
  func.func @kernel(%arg0: i32, %arg1: i32, %arg2: memref<1x1x12x144xbf16, #tpu.memory_space<vmem>>, %arg3: memref<1x1x12x144xbf16, #tpu.memory_space<vmem>>, %arg4: memref<32x108xbf16, #tpu.memory_space<vmem>>, %arg5: memref<32x1xf32, #tpu.memory_space<vmem>>, %arg6: memref<1x1x32x144xbf16, #tpu.memory_space<vmem>>, %arg7: memref<108x144xbf16, #tpu.memory_space<vmem>>) attributes {dimension_semantics = [#tpu.dimension_semantics<parallel>, #tpu.dimension_semantics<parallel>], iteration_bounds = array<i64: 2, 2>, scalar_prefetch = 0 : i64, scratch_operands = 1 : i64, tpu.core_type = #tpu.core_type<tc>, window_params = [{transform_indices = @transform_0, window_bounds = array<i64: 1, 1, 12, 144>}, {transform_indices = @transform_1, window_bounds = array<i64: 1, 1, 12, 144>}, {pipeline_mode = #tpu.pipeline_mode<synchronous>, transform_indices = @transform_2, window_bounds = array<i64: 32, 108>}, {pipeline_mode = #tpu.pipeline_mode<synchronous>, transform_indices = @transform_3, window_bounds = array<i64: 32, 1>}, {transform_indices = @transform_4, window_bounds = array<i64: 1, 1, 32, 144>}]} {
    %c0 = arith.constant 0 : index
    %c0_0 = arith.constant 0 : index
    %c0_1 = arith.constant 0 : index
    %c0_2 = arith.constant 0 : index
    %0 = vector.load %arg2[%c0, %c0_0, %c0_1, %c0_2] : memref<1x1x12x144xbf16, #tpu.memory_space<vmem>>, vector<1x1x12x144xbf16>
    %1 = vector.shape_cast %0 : vector<1x1x12x144xbf16> to vector<12x144xbf16>
    %c0_3 = arith.constant 0 : index
    %c0_4 = arith.constant 0 : index
    %2 = vector.load %arg7[%c0_3, %c0_4] : memref<108x144xbf16, #tpu.memory_space<vmem>>, vector<12x144xbf16>
    tpu.vector_store %arg7[%c0_3, %c0_4], %1 {strides = array<i32>} : memref<108x144xbf16, #tpu.memory_space<vmem>>, vector<12x144xbf16>,
    %c0_5 = arith.constant 0 : index
    %c0_6 = arith.constant 0 : index
    %c0_7 = arith.constant 0 : index
    %c1 = arith.constant 1 : index
    %3 = vector.load %arg2[%c0_5, %c0_6, %c0_7, %c1] : memref<1x1x12x144xbf16, #tpu.memory_space<vmem>>, vector<1x1x12x143xbf16>
    %4 = vector.shape_cast %3 : vector<1x1x12x143xbf16> to vector<12x143xbf16>
    %c12 = arith.constant 12 : index
    %c0_8 = arith.constant 0 : index
    %5 = vector.load %arg7[%c12, %c0_8] : memref<108x144xbf16, #tpu.memory_space<vmem>>, vector<12x143xbf16>
    tpu.vector_store %arg7[%c12, %c0_8], %4 {strides = array<i32>} : memref<108x144xbf16, #tpu.memory_space<vmem>>, vector<12x143xbf16>,
    %c0_9 = arith.constant 0 : index
    %c0_10 = arith.constant 0 : index
    %c0_11 = arith.constant 0 : index
    %c0_12 = arith.constant 0 : index
    %6 = vector.load %arg3[%c0_9, %c0_10, %c0_11, %c0_12] : memref<1x1x12x144xbf16, #tpu.memory_space<vmem>>, vector<1x1x12x1xbf16>
    %7 = vector.shape_cast %6 : vector<1x1x12x1xbf16> to vector<12x1xbf16>
    %c12_13 = arith.constant 12 : index
    %c143 = arith.constant 143 : index
    %8 = vector.load %arg7[%c12_13, %c143] : memref<108x144xbf16, #tpu.memory_space<vmem>>, vector<12x1xbf16>
    tpu.vector_store %arg7[%c12_13, %c143], %7 {strides = array<i32>} : memref<108x144xbf16, #tpu.memory_space<vmem>>, vector<12x1xbf16>,
    %c0_14 = arith.constant 0 : index
    %c0_15 = arith.constant 0 : index
    %c0_16 = arith.constant 0 : index
    %c2 = arith.constant 2 : index
    %9 = vector.load %arg2[%c0_14, %c0_15, %c0_16, %c2] : memref<1x1x12x144xbf16, #tpu.memory_space<vmem>>, vector<1x1x12x142xbf16>
    %10 = vector.shape_cast %9 : vector<1x1x12x142xbf16> to vector<12x142xbf16>
    %c24 = arith.constant 24 : index
    %c0_17 = arith.constant 0 : index
    %11 = vector.load %arg7[%c24, %c0_17] : memref<108x144xbf16, #tpu.memory_space<vmem>>, vector<12x142xbf16>
    tpu.vector_store %arg7[%c24, %c0_17], %10 {strides = array<i32>} : memref<108x144xbf16, #tpu.memory_space<vmem>>, vector<12x142xbf16>,
    %c0_18 = arith.constant 0 : index
    %c0_19 = arith.constant 0 : index
    %c0_20 = arith.constant 0 : index
    %c0_21 = arith.constant 0 : index
    %12 = vector.load %arg3[%c0_18, %c0_19, %c0_20, %c0_21] : memref<1x1x12x144xbf16, #tpu.memory_space<vmem>>, vector<1x1x12x2xbf16>
    %13 = vector.shape_cast %12 : vector<1x1x12x2xbf16> to vector<12x2xbf16>
    %c24_22 = arith.constant 24 : index
    %c142 = arith.constant 142 : index
    %14 = vector.load %arg7[%c24_22, %c142] : memref<108x144xbf16, #tpu.memory_space<vmem>>, vector<12x2xbf16>
    tpu.vector_store %arg7[%c24_22, %c142], %13 {strides = array<i32>} : memref<108x144xbf16, #tpu.memory_space<vmem>>, vector<12x2xbf16>,
    %c0_23 = arith.constant 0 : index
    %c0_24 = arith.constant 0 : index
    %c0_25 = arith.constant 0 : index
    %c18 = arith.constant 18 : index
    %15 = vector.load %arg2[%c0_23, %c0_24, %c0_25, %c18] : memref<1x1x12x144xbf16, #tpu.memory_space<vmem>>, vector<1x1x12x126xbf16>
    %16 = vector.shape_cast %15 : vector<1x1x12x126xbf16> to vector<12x126xbf16>
    %c36 = arith.constant 36 : index
    %c0_26 = arith.constant 0 : index
    %17 = vector.load %arg7[%c36, %c0_26] : memref<108x144xbf16, #tpu.memory_space<vmem>>, vector<12x126xbf16>
    tpu.vector_store %arg7[%c36, %c0_26], %16 {strides = array<i32>} : memref<108x144xbf16, #tpu.memory_space<vmem>>, vector<12x126xbf16>,
    %c0_27 = arith.constant 0 : index
    %c0_28 = arith.constant 0 : index
    %c0_29 = arith.constant 0 : index
    %c0_30 = arith.constant 0 : index
    %18 = vector.load %arg3[%c0_27, %c0_28, %c0_29, %c0_30] : memref<1x1x12x144xbf16, #tpu.memory_space<vmem>>, vector<1x1x12x18xbf16>
    %19 = vector.shape_cast %18 : vector<1x1x12x18xbf16> to vector<12x18xbf16>
    %c36_31 = arith.constant 36 : index
    %c126 = arith.constant 126 : index
    %20 = vector.load %arg7[%c36_31, %c126] : memref<108x144xbf16, #tpu.memory_space<vmem>>, vector<12x18xbf16>
    tpu.vector_store %arg7[%c36_31, %c126], %19 {strides = array<i32>} : memref<108x144xbf16, #tpu.memory_space<vmem>>, vector<12x18xbf16>,
    %c0_32 = arith.constant 0 : index
    %c0_33 = arith.constant 0 : index
    %c0_34 = arith.constant 0 : index
    %c19 = arith.constant 19 : index
    %21 = vector.load %arg2[%c0_32, %c0_33, %c0_34, %c19] : memref<1x1x12x144xbf16, #tpu.memory_space<vmem>>, vector<1x1x12x125xbf16>
    %22 = vector.shape_cast %21 : vector<1x1x12x125xbf16> to vector<12x125xbf16>
    %c48 = arith.constant 48 : index
    %c0_35 = arith.constant 0 : index
    %23 = vector.load %arg7[%c48, %c0_35] : memref<108x144xbf16, #tpu.memory_space<vmem>>, vector<12x125xbf16>
    tpu.vector_store %arg7[%c48, %c0_35], %22 {strides = array<i32>} : memref<108x144xbf16, #tpu.memory_space<vmem>>, vector<12x125xbf16>,
    %c0_36 = arith.constant 0 : index
    %c0_37 = arith.constant 0 : index
    %c0_38 = arith.constant 0 : index
    %c0_39 = arith.constant 0 : index
    %24 = vector.load %arg3[%c0_36, %c0_37, %c0_38, %c0_39] : memref<1x1x12x144xbf16, #tpu.memory_space<vmem>>, vector<1x1x12x19xbf16>
    %25 = vector.shape_cast %24 : vector<1x1x12x19xbf16> to vector<12x19xbf16>
    %c48_40 = arith.constant 48 : index
    %c125 = arith.constant 125 : index
    %26 = vector.load %arg7[%c48_40, %c125] : memref<108x144xbf16, #tpu.memory_space<vmem>>, vector<12x19xbf16>
    tpu.vector_store %arg7[%c48_40, %c125], %25 {strides = array<i32>} : memref<108x144xbf16, #tpu.memory_space<vmem>>, vector<12x19xbf16>,
    %c0_41 = arith.constant 0 : index
    %c0_42 = arith.constant 0 : index
    %c0_43 = arith.constant 0 : index
    %c20 = arith.constant 20 : index
    %27 = vector.load %arg2[%c0_41, %c0_42, %c0_43, %c20] : memref<1x1x12x144xbf16, #tpu.memory_space<vmem>>, vector<1x1x12x124xbf16>
    %28 = vector.shape_cast %27 : vector<1x1x12x124xbf16> to vector<12x124xbf16>
    %c60 = arith.constant 60 : index
    %c0_44 = arith.constant 0 : index
    %29 = vector.load %arg7[%c60, %c0_44] : memref<108x144xbf16, #tpu.memory_space<vmem>>, vector<12x124xbf16>
    tpu.vector_store %arg7[%c60, %c0_44], %28 {strides = array<i32>} : memref<108x144xbf16, #tpu.memory_space<vmem>>, vector<12x124xbf16>,
    %c0_45 = arith.constant 0 : index
    %c0_46 = arith.constant 0 : index
    %c0_47 = arith.constant 0 : index
    %c0_48 = arith.constant 0 : index
    %30 = vector.load %arg3[%c0_45, %c0_46, %c0_47, %c0_48] : memref<1x1x12x144xbf16, #tpu.memory_space<vmem>>, vector<1x1x12x20xbf16>
    %31 = vector.shape_cast %30 : vector<1x1x12x20xbf16> to vector<12x20xbf16>
    %c60_49 = arith.constant 60 : index
    %c124 = arith.constant 124 : index
    %32 = vector.load %arg7[%c60_49, %c124] : memref<108x144xbf16, #tpu.memory_space<vmem>>, vector<12x20xbf16>
    tpu.vector_store %arg7[%c60_49, %c124], %31 {strides = array<i32>} : memref<108x144xbf16, #tpu.memory_space<vmem>>, vector<12x20xbf16>,
    %c0_50 = arith.constant 0 : index
    %c0_51 = arith.constant 0 : index
    %c0_52 = arith.constant 0 : index
    %c36_53 = arith.constant 36 : index
    %33 = vector.load %arg2[%c0_50, %c0_51, %c0_52, %c36_53] : memref<1x1x12x144xbf16, #tpu.memory_space<vmem>>, vector<1x1x12x108xbf16>
    %34 = vector.shape_cast %33 : vector<1x1x12x108xbf16> to vector<12x108xbf16>
    %c72 = arith.constant 72 : index
    %c0_54 = arith.constant 0 : index
    %35 = vector.load %arg7[%c72, %c0_54] : memref<108x144xbf16, #tpu.memory_space<vmem>>, vector<12x108xbf16>
    tpu.vector_store %arg7[%c72, %c0_54], %34 {strides = array<i32>} : memref<108x144xbf16, #tpu.memory_space<vmem>>, vector<12x108xbf16>,
    %c0_55 = arith.constant 0 : index
    %c0_56 = arith.constant 0 : index
    %c0_57 = arith.constant 0 : index
    %c0_58 = arith.constant 0 : index
    %36 = vector.load %arg3[%c0_55, %c0_56, %c0_57, %c0_58] : memref<1x1x12x144xbf16, #tpu.memory_space<vmem>>, vector<1x1x12x36xbf16>
    %37 = vector.shape_cast %36 : vector<1x1x12x36xbf16> to vector<12x36xbf16>
    %c72_59 = arith.constant 72 : index
    %c108 = arith.constant 108 : index
    %38 = vector.load %arg7[%c72_59, %c108] : memref<108x144xbf16, #tpu.memory_space<vmem>>, vector<12x36xbf16>
    tpu.vector_store %arg7[%c72_59, %c108], %37 {strides = array<i32>} : memref<108x144xbf16, #tpu.memory_space<vmem>>, vector<12x36xbf16>,
    %c0_60 = arith.constant 0 : index
    %c0_61 = arith.constant 0 : index
    %c0_62 = arith.constant 0 : index
    %c37 = arith.constant 37 : index
    %39 = vector.load %arg2[%c0_60, %c0_61, %c0_62, %c37] : memref<1x1x12x144xbf16, #tpu.memory_space<vmem>>, vector<1x1x12x107xbf16>
    %40 = vector.shape_cast %39 : vector<1x1x12x107xbf16> to vector<12x107xbf16>
    %c84 = arith.constant 84 : index
    %c0_63 = arith.constant 0 : index
    %41 = vector.load %arg7[%c84, %c0_63] : memref<108x144xbf16, #tpu.memory_space<vmem>>, vector<12x107xbf16>
    tpu.vector_store %arg7[%c84, %c0_63], %40 {strides = array<i32>} : memref<108x144xbf16, #tpu.memory_space<vmem>>, vector<12x107xbf16>,
    %c0_64 = arith.constant 0 : index
    %c0_65 = arith.constant 0 : index
    %c0_66 = arith.constant 0 : index
    %c0_67 = arith.constant 0 : index
    %42 = vector.load %arg3[%c0_64, %c0_65, %c0_66, %c0_67] : memref<1x1x12x144xbf16, #tpu.memory_space<vmem>>, vector<1x1x12x37xbf16>
    %43 = vector.shape_cast %42 : vector<1x1x12x37xbf16> to vector<12x37xbf16>
    %c84_68 = arith.constant 84 : index
    %c107 = arith.constant 107 : index
    %44 = vector.load %arg7[%c84_68, %c107] : memref<108x144xbf16, #tpu.memory_space<vmem>>, vector<12x37xbf16>
    tpu.vector_store %arg7[%c84_68, %c107], %43 {strides = array<i32>} : memref<108x144xbf16, #tpu.memory_space<vmem>>, vector<12x37xbf16>,
    %c0_69 = arith.constant 0 : index
    %c0_70 = arith.constant 0 : index
    %c0_71 = arith.constant 0 : index
    %c38 = arith.constant 38 : index
    %45 = vector.load %arg2[%c0_69, %c0_70, %c0_71, %c38] : memref<1x1x12x144xbf16, #tpu.memory_space<vmem>>, vector<1x1x12x106xbf16>
    %46 = vector.shape_cast %45 : vector<1x1x12x106xbf16> to vector<12x106xbf16>
    %c96 = arith.constant 96 : index
    %c0_72 = arith.constant 0 : index
    %47 = vector.load %arg7[%c96, %c0_72] : memref<108x144xbf16, #tpu.memory_space<vmem>>, vector<12x106xbf16>
    tpu.vector_store %arg7[%c96, %c0_72], %46 {strides = array<i32>} : memref<108x144xbf16, #tpu.memory_space<vmem>>, vector<12x106xbf16>,
    %c0_73 = arith.constant 0 : index
    %c0_74 = arith.constant 0 : index
    %c0_75 = arith.constant 0 : index
    %c0_76 = arith.constant 0 : index
    %48 = vector.load %arg3[%c0_73, %c0_74, %c0_75, %c0_76] : memref<1x1x12x144xbf16, #tpu.memory_space<vmem>>, vector<1x1x12x38xbf16>
    %49 = vector.shape_cast %48 : vector<1x1x12x38xbf16> to vector<12x38xbf16>
    %c96_77 = arith.constant 96 : index
    %c106 = arith.constant 106 : index
    %50 = vector.load %arg7[%c96_77, %c106] : memref<108x144xbf16, #tpu.memory_space<vmem>>, vector<12x38xbf16>
    tpu.vector_store %arg7[%c96_77, %c106], %49 {strides = array<i32>} : memref<108x144xbf16, #tpu.memory_space<vmem>>, vector<12x38xbf16>,
    %c0_78 = arith.constant 0 : index
    %c0_79 = arith.constant 0 : index
    %51 = vector.load %arg4[%c0_78, %c0_79] : memref<32x108xbf16, #tpu.memory_space<vmem>>, vector<32x108xbf16>
    %c0_80 = arith.constant 0 : index
    %c0_81 = arith.constant 0 : index
    %52 = vector.load %arg7[%c0_80, %c0_81] : memref<108x144xbf16, #tpu.memory_space<vmem>>, vector<108x144xbf16>
    %cst = arith.constant dense<0.000000e+00> : vector<32x144xf32>
    %53 = tpu.matmul %51, %52, %cst {dimension_numbers = #tpu.dot_dimension_numbers<[1], [0], [0], [1], [0, 0, 1, 1], [], []>} : vector<32x108xbf16>, vector<108x144xbf16>, vector<32x144xf32> -> vector<32x144xf32>
    %c0_82 = arith.constant 0 : index
    %c0_83 = arith.constant 0 : index
    %54 = vector.load %arg5[%c0_82, %c0_83] : memref<32x1xf32, #tpu.memory_space<vmem>>, vector<32x1xf32>
    %55 = vector.broadcast %54 : vector<32x1xf32> to vector<32x144xf32>
    %56 = arith.addf %53, %55 : vector<32x144xf32>
    %cst_84 = arith.constant 0.000000e+00 : f32
    %57 = vector.broadcast %cst_84 : f32 to vector<32x144xf32>
    %58 = arith.maximumf %56, %57 : vector<32x144xf32>
    %59 = arith.truncf %58 : vector<32x144xf32> to vector<32x144xbf16>
    %c0_85 = arith.constant 0 : index
    %c0_86 = arith.constant 0 : index
    %c0_87 = arith.constant 0 : index
    %c0_88 = arith.constant 0 : index
    %60 = vector.load %arg6[%c0_85, %c0_86, %c0_87, %c0_88] : memref<1x1x32x144xbf16, #tpu.memory_space<vmem>>, vector<1x1x32x144xbf16>
    %61 = vector.shape_cast %60 : vector<1x1x32x144xbf16> to vector<32x144xbf16>
    %62 = vector.shape_cast %59 : vector<32x144xbf16> to vector<1x1x32x144xbf16>
    tpu.vector_store %arg6[%c0_85, %c0_86, %c0_87, %c0_88], %62 {strides = array<i32>} : memref<1x1x32x144xbf16, #tpu.memory_space<vmem>>, vector<1x1x32x144xbf16>,
    return
  }
  func.func @transform_0(%arg0: i32, %arg1: i32) -> (i32, i32, i32, i32) {
    %c0_i32 = arith.constant 0 : i32
    %c0_i32_0 = arith.constant 0 : i32
    %c0_i32_1 = arith.constant 0 : i32
    return %arg0, %arg1, %c0_i32, %c0_i32_0 : i32, i32, i32, i32
  }
  func.func @transform_1(%arg0: i32, %arg1: i32) -> (i32, i32, i32, i32) {
    %c1_i32 = arith.constant 1 : i32
    %0 = arith.addi %arg1, %c1_i32 : i32
    %c0_i32 = arith.constant 0 : i32
    %c0_i32_0 = arith.constant 0 : i32
    %c0_i32_1 = arith.constant 0 : i32
    return %arg0, %0, %c0_i32, %c0_i32_0 : i32, i32, i32, i32
  }
  func.func @transform_2(%arg0: i32, %arg1: i32) -> (i32, i32) {
    %c0_i32 = arith.constant 0 : i32
    %c0_i32_0 = arith.constant 0 : i32
    %c0_i32_1 = arith.constant 0 : i32
    return %c0_i32, %c0_i32_0 : i32, i32
  }
  func.func @transform_3(%arg0: i32, %arg1: i32) -> (i32, i32) {
    %c0_i32 = arith.constant 0 : i32
    %c0_i32_0 = arith.constant 0 : i32
    %c0_i32_1 = arith.constant 0 : i32
    return %c0_i32, %c0_i32_0 : i32, i32
  }
  func.func @transform_4(%arg0: i32, %arg1: i32) -> (i32, i32, i32, i32) {
    %c0_i32 = arith.constant 0 : i32
    %c0_i32_0 = arith.constant 0 : i32
    %c0_i32_1 = arith.constant 0 : i32
    return %arg0, %arg1, %c0_i32, %c0_i32_0 : i32, i32, i32, i32
  }
}

module attributes {stable_mosaic.version = 11 : i64} {
  func.func @kernel(%arg0: i32, %arg1: i32, %arg2: memref<1x1x8x272xbf16, #tpu.memory_space<vmem>>, %arg3: memref<1x1x8x272xbf16, #tpu.memory_space<vmem>>, %arg4: memref<16x72xbf16, #tpu.memory_space<vmem>>, %arg5: memref<16x1xf32, #tpu.memory_space<vmem>>, %arg6: memref<1x1x16x272xbf16, #tpu.memory_space<vmem>>, %arg7: memref<72x272xbf16, #tpu.memory_space<vmem>>) attributes {dimension_semantics = [#tpu.dimension_semantics<parallel>, #tpu.dimension_semantics<parallel>], iteration_bounds = array<i64: 2, 4>, scalar_prefetch = 0 : i64, scratch_operands = 1 : i64, tpu.core_type = #tpu.core_type<tc>, window_params = [{transform_indices = @transform_0, window_bounds = array<i64: 1, 1, 8, 272>}, {transform_indices = @transform_1, window_bounds = array<i64: 1, 1, 8, 272>}, {pipeline_mode = #tpu.pipeline_mode<synchronous>, transform_indices = @transform_2, window_bounds = array<i64: 16, 72>}, {pipeline_mode = #tpu.pipeline_mode<synchronous>, transform_indices = @transform_3, window_bounds = array<i64: 16, 1>}, {transform_indices = @transform_4, window_bounds = array<i64: 1, 1, 16, 272>}]} {
    %c0 = arith.constant 0 : index
    %c0_0 = arith.constant 0 : index
    %c0_1 = arith.constant 0 : index
    %c0_2 = arith.constant 0 : index
    %0 = vector.load %arg2[%c0, %c0_0, %c0_1, %c0_2] : memref<1x1x8x272xbf16, #tpu.memory_space<vmem>>, vector<1x1x8x272xbf16>
    %1 = vector.shape_cast %0 : vector<1x1x8x272xbf16> to vector<8x272xbf16>
    %c0_3 = arith.constant 0 : index
    %c0_4 = arith.constant 0 : index
    %2 = vector.load %arg7[%c0_3, %c0_4] : memref<72x272xbf16, #tpu.memory_space<vmem>>, vector<8x272xbf16>
    tpu.vector_store %arg7[%c0_3, %c0_4], %1 {strides = array<i32>} : memref<72x272xbf16, #tpu.memory_space<vmem>>, vector<8x272xbf16>,
    %c0_5 = arith.constant 0 : index
    %c0_6 = arith.constant 0 : index
    %c0_7 = arith.constant 0 : index
    %c1 = arith.constant 1 : index
    %3 = vector.load %arg2[%c0_5, %c0_6, %c0_7, %c1] : memref<1x1x8x272xbf16, #tpu.memory_space<vmem>>, vector<1x1x8x271xbf16>
    %4 = vector.shape_cast %3 : vector<1x1x8x271xbf16> to vector<8x271xbf16>
    %c8 = arith.constant 8 : index
    %c0_8 = arith.constant 0 : index
    %5 = vector.load %arg7[%c8, %c0_8] : memref<72x272xbf16, #tpu.memory_space<vmem>>, vector<8x271xbf16>
    tpu.vector_store %arg7[%c8, %c0_8], %4 {strides = array<i32>} : memref<72x272xbf16, #tpu.memory_space<vmem>>, vector<8x271xbf16>,
    %c0_9 = arith.constant 0 : index
    %c0_10 = arith.constant 0 : index
    %c0_11 = arith.constant 0 : index
    %c0_12 = arith.constant 0 : index
    %6 = vector.load %arg3[%c0_9, %c0_10, %c0_11, %c0_12] : memref<1x1x8x272xbf16, #tpu.memory_space<vmem>>, vector<1x1x8x1xbf16>
    %7 = vector.shape_cast %6 : vector<1x1x8x1xbf16> to vector<8x1xbf16>
    %c8_13 = arith.constant 8 : index
    %c271 = arith.constant 271 : index
    %8 = vector.load %arg7[%c8_13, %c271] : memref<72x272xbf16, #tpu.memory_space<vmem>>, vector<8x1xbf16>
    tpu.vector_store %arg7[%c8_13, %c271], %7 {strides = array<i32>} : memref<72x272xbf16, #tpu.memory_space<vmem>>, vector<8x1xbf16>,
    %c0_14 = arith.constant 0 : index
    %c0_15 = arith.constant 0 : index
    %c0_16 = arith.constant 0 : index
    %c2 = arith.constant 2 : index
    %9 = vector.load %arg2[%c0_14, %c0_15, %c0_16, %c2] : memref<1x1x8x272xbf16, #tpu.memory_space<vmem>>, vector<1x1x8x270xbf16>
    %10 = vector.shape_cast %9 : vector<1x1x8x270xbf16> to vector<8x270xbf16>
    %c16 = arith.constant 16 : index
    %c0_17 = arith.constant 0 : index
    %11 = vector.load %arg7[%c16, %c0_17] : memref<72x272xbf16, #tpu.memory_space<vmem>>, vector<8x270xbf16>
    tpu.vector_store %arg7[%c16, %c0_17], %10 {strides = array<i32>} : memref<72x272xbf16, #tpu.memory_space<vmem>>, vector<8x270xbf16>,
    %c0_18 = arith.constant 0 : index
    %c0_19 = arith.constant 0 : index
    %c0_20 = arith.constant 0 : index
    %c0_21 = arith.constant 0 : index
    %12 = vector.load %arg3[%c0_18, %c0_19, %c0_20, %c0_21] : memref<1x1x8x272xbf16, #tpu.memory_space<vmem>>, vector<1x1x8x2xbf16>
    %13 = vector.shape_cast %12 : vector<1x1x8x2xbf16> to vector<8x2xbf16>
    %c16_22 = arith.constant 16 : index
    %c270 = arith.constant 270 : index
    %14 = vector.load %arg7[%c16_22, %c270] : memref<72x272xbf16, #tpu.memory_space<vmem>>, vector<8x2xbf16>
    tpu.vector_store %arg7[%c16_22, %c270], %13 {strides = array<i32>} : memref<72x272xbf16, #tpu.memory_space<vmem>>, vector<8x2xbf16>,
    %c0_23 = arith.constant 0 : index
    %c0_24 = arith.constant 0 : index
    %c0_25 = arith.constant 0 : index
    %c34 = arith.constant 34 : index
    %15 = vector.load %arg2[%c0_23, %c0_24, %c0_25, %c34] : memref<1x1x8x272xbf16, #tpu.memory_space<vmem>>, vector<1x1x8x238xbf16>
    %16 = vector.shape_cast %15 : vector<1x1x8x238xbf16> to vector<8x238xbf16>
    %c24 = arith.constant 24 : index
    %c0_26 = arith.constant 0 : index
    %17 = vector.load %arg7[%c24, %c0_26] : memref<72x272xbf16, #tpu.memory_space<vmem>>, vector<8x238xbf16>
    tpu.vector_store %arg7[%c24, %c0_26], %16 {strides = array<i32>} : memref<72x272xbf16, #tpu.memory_space<vmem>>, vector<8x238xbf16>,
    %c0_27 = arith.constant 0 : index
    %c0_28 = arith.constant 0 : index
    %c0_29 = arith.constant 0 : index
    %c0_30 = arith.constant 0 : index
    %18 = vector.load %arg3[%c0_27, %c0_28, %c0_29, %c0_30] : memref<1x1x8x272xbf16, #tpu.memory_space<vmem>>, vector<1x1x8x34xbf16>
    %19 = vector.shape_cast %18 : vector<1x1x8x34xbf16> to vector<8x34xbf16>
    %c24_31 = arith.constant 24 : index
    %c238 = arith.constant 238 : index
    %20 = vector.load %arg7[%c24_31, %c238] : memref<72x272xbf16, #tpu.memory_space<vmem>>, vector<8x34xbf16>
    tpu.vector_store %arg7[%c24_31, %c238], %19 {strides = array<i32>} : memref<72x272xbf16, #tpu.memory_space<vmem>>, vector<8x34xbf16>,
    %c0_32 = arith.constant 0 : index
    %c0_33 = arith.constant 0 : index
    %c0_34 = arith.constant 0 : index
    %c35 = arith.constant 35 : index
    %21 = vector.load %arg2[%c0_32, %c0_33, %c0_34, %c35] : memref<1x1x8x272xbf16, #tpu.memory_space<vmem>>, vector<1x1x8x237xbf16>
    %22 = vector.shape_cast %21 : vector<1x1x8x237xbf16> to vector<8x237xbf16>
    %c32 = arith.constant 32 : index
    %c0_35 = arith.constant 0 : index
    %23 = vector.load %arg7[%c32, %c0_35] : memref<72x272xbf16, #tpu.memory_space<vmem>>, vector<8x237xbf16>
    tpu.vector_store %arg7[%c32, %c0_35], %22 {strides = array<i32>} : memref<72x272xbf16, #tpu.memory_space<vmem>>, vector<8x237xbf16>,
    %c0_36 = arith.constant 0 : index
    %c0_37 = arith.constant 0 : index
    %c0_38 = arith.constant 0 : index
    %c0_39 = arith.constant 0 : index
    %24 = vector.load %arg3[%c0_36, %c0_37, %c0_38, %c0_39] : memref<1x1x8x272xbf16, #tpu.memory_space<vmem>>, vector<1x1x8x35xbf16>
    %25 = vector.shape_cast %24 : vector<1x1x8x35xbf16> to vector<8x35xbf16>
    %c32_40 = arith.constant 32 : index
    %c237 = arith.constant 237 : index
    %26 = vector.load %arg7[%c32_40, %c237] : memref<72x272xbf16, #tpu.memory_space<vmem>>, vector<8x35xbf16>
    tpu.vector_store %arg7[%c32_40, %c237], %25 {strides = array<i32>} : memref<72x272xbf16, #tpu.memory_space<vmem>>, vector<8x35xbf16>,
    %c0_41 = arith.constant 0 : index
    %c0_42 = arith.constant 0 : index
    %c0_43 = arith.constant 0 : index
    %c36 = arith.constant 36 : index
    %27 = vector.load %arg2[%c0_41, %c0_42, %c0_43, %c36] : memref<1x1x8x272xbf16, #tpu.memory_space<vmem>>, vector<1x1x8x236xbf16>
    %28 = vector.shape_cast %27 : vector<1x1x8x236xbf16> to vector<8x236xbf16>
    %c40 = arith.constant 40 : index
    %c0_44 = arith.constant 0 : index
    %29 = vector.load %arg7[%c40, %c0_44] : memref<72x272xbf16, #tpu.memory_space<vmem>>, vector<8x236xbf16>
    tpu.vector_store %arg7[%c40, %c0_44], %28 {strides = array<i32>} : memref<72x272xbf16, #tpu.memory_space<vmem>>, vector<8x236xbf16>,
    %c0_45 = arith.constant 0 : index
    %c0_46 = arith.constant 0 : index
    %c0_47 = arith.constant 0 : index
    %c0_48 = arith.constant 0 : index
    %30 = vector.load %arg3[%c0_45, %c0_46, %c0_47, %c0_48] : memref<1x1x8x272xbf16, #tpu.memory_space<vmem>>, vector<1x1x8x36xbf16>
    %31 = vector.shape_cast %30 : vector<1x1x8x36xbf16> to vector<8x36xbf16>
    %c40_49 = arith.constant 40 : index
    %c236 = arith.constant 236 : index
    %32 = vector.load %arg7[%c40_49, %c236] : memref<72x272xbf16, #tpu.memory_space<vmem>>, vector<8x36xbf16>
    tpu.vector_store %arg7[%c40_49, %c236], %31 {strides = array<i32>} : memref<72x272xbf16, #tpu.memory_space<vmem>>, vector<8x36xbf16>,
    %c0_50 = arith.constant 0 : index
    %c0_51 = arith.constant 0 : index
    %c0_52 = arith.constant 0 : index
    %c68 = arith.constant 68 : index
    %33 = vector.load %arg2[%c0_50, %c0_51, %c0_52, %c68] : memref<1x1x8x272xbf16, #tpu.memory_space<vmem>>, vector<1x1x8x204xbf16>
    %34 = vector.shape_cast %33 : vector<1x1x8x204xbf16> to vector<8x204xbf16>
    %c48 = arith.constant 48 : index
    %c0_53 = arith.constant 0 : index
    %35 = vector.load %arg7[%c48, %c0_53] : memref<72x272xbf16, #tpu.memory_space<vmem>>, vector<8x204xbf16>
    tpu.vector_store %arg7[%c48, %c0_53], %34 {strides = array<i32>} : memref<72x272xbf16, #tpu.memory_space<vmem>>, vector<8x204xbf16>,
    %c0_54 = arith.constant 0 : index
    %c0_55 = arith.constant 0 : index
    %c0_56 = arith.constant 0 : index
    %c0_57 = arith.constant 0 : index
    %36 = vector.load %arg3[%c0_54, %c0_55, %c0_56, %c0_57] : memref<1x1x8x272xbf16, #tpu.memory_space<vmem>>, vector<1x1x8x68xbf16>
    %37 = vector.shape_cast %36 : vector<1x1x8x68xbf16> to vector<8x68xbf16>
    %c48_58 = arith.constant 48 : index
    %c204 = arith.constant 204 : index
    %38 = vector.load %arg7[%c48_58, %c204] : memref<72x272xbf16, #tpu.memory_space<vmem>>, vector<8x68xbf16>
    tpu.vector_store %arg7[%c48_58, %c204], %37 {strides = array<i32>} : memref<72x272xbf16, #tpu.memory_space<vmem>>, vector<8x68xbf16>,
    %c0_59 = arith.constant 0 : index
    %c0_60 = arith.constant 0 : index
    %c0_61 = arith.constant 0 : index
    %c69 = arith.constant 69 : index
    %39 = vector.load %arg2[%c0_59, %c0_60, %c0_61, %c69] : memref<1x1x8x272xbf16, #tpu.memory_space<vmem>>, vector<1x1x8x203xbf16>
    %40 = vector.shape_cast %39 : vector<1x1x8x203xbf16> to vector<8x203xbf16>
    %c56 = arith.constant 56 : index
    %c0_62 = arith.constant 0 : index
    %41 = vector.load %arg7[%c56, %c0_62] : memref<72x272xbf16, #tpu.memory_space<vmem>>, vector<8x203xbf16>
    tpu.vector_store %arg7[%c56, %c0_62], %40 {strides = array<i32>} : memref<72x272xbf16, #tpu.memory_space<vmem>>, vector<8x203xbf16>,
    %c0_63 = arith.constant 0 : index
    %c0_64 = arith.constant 0 : index
    %c0_65 = arith.constant 0 : index
    %c0_66 = arith.constant 0 : index
    %42 = vector.load %arg3[%c0_63, %c0_64, %c0_65, %c0_66] : memref<1x1x8x272xbf16, #tpu.memory_space<vmem>>, vector<1x1x8x69xbf16>
    %43 = vector.shape_cast %42 : vector<1x1x8x69xbf16> to vector<8x69xbf16>
    %c56_67 = arith.constant 56 : index
    %c203 = arith.constant 203 : index
    %44 = vector.load %arg7[%c56_67, %c203] : memref<72x272xbf16, #tpu.memory_space<vmem>>, vector<8x69xbf16>
    tpu.vector_store %arg7[%c56_67, %c203], %43 {strides = array<i32>} : memref<72x272xbf16, #tpu.memory_space<vmem>>, vector<8x69xbf16>,
    %c0_68 = arith.constant 0 : index
    %c0_69 = arith.constant 0 : index
    %c0_70 = arith.constant 0 : index
    %c70 = arith.constant 70 : index
    %45 = vector.load %arg2[%c0_68, %c0_69, %c0_70, %c70] : memref<1x1x8x272xbf16, #tpu.memory_space<vmem>>, vector<1x1x8x202xbf16>
    %46 = vector.shape_cast %45 : vector<1x1x8x202xbf16> to vector<8x202xbf16>
    %c64 = arith.constant 64 : index
    %c0_71 = arith.constant 0 : index
    %47 = vector.load %arg7[%c64, %c0_71] : memref<72x272xbf16, #tpu.memory_space<vmem>>, vector<8x202xbf16>
    tpu.vector_store %arg7[%c64, %c0_71], %46 {strides = array<i32>} : memref<72x272xbf16, #tpu.memory_space<vmem>>, vector<8x202xbf16>,
    %c0_72 = arith.constant 0 : index
    %c0_73 = arith.constant 0 : index
    %c0_74 = arith.constant 0 : index
    %c0_75 = arith.constant 0 : index
    %48 = vector.load %arg3[%c0_72, %c0_73, %c0_74, %c0_75] : memref<1x1x8x272xbf16, #tpu.memory_space<vmem>>, vector<1x1x8x70xbf16>
    %49 = vector.shape_cast %48 : vector<1x1x8x70xbf16> to vector<8x70xbf16>
    %c64_76 = arith.constant 64 : index
    %c202 = arith.constant 202 : index
    %50 = vector.load %arg7[%c64_76, %c202] : memref<72x272xbf16, #tpu.memory_space<vmem>>, vector<8x70xbf16>
    tpu.vector_store %arg7[%c64_76, %c202], %49 {strides = array<i32>} : memref<72x272xbf16, #tpu.memory_space<vmem>>, vector<8x70xbf16>,
    %c0_77 = arith.constant 0 : index
    %c0_78 = arith.constant 0 : index
    %51 = vector.load %arg4[%c0_77, %c0_78] : memref<16x72xbf16, #tpu.memory_space<vmem>>, vector<16x72xbf16>
    %c0_79 = arith.constant 0 : index
    %c0_80 = arith.constant 0 : index
    %52 = vector.load %arg7[%c0_79, %c0_80] : memref<72x272xbf16, #tpu.memory_space<vmem>>, vector<72x272xbf16>
    %cst = arith.constant dense<0.000000e+00> : vector<16x272xf32>
    %53 = tpu.matmul %51, %52, %cst {dimension_numbers = #tpu.dot_dimension_numbers<[1], [0], [0], [1], [0, 0, 1, 1], [], []>} : vector<16x72xbf16>, vector<72x272xbf16>, vector<16x272xf32> -> vector<16x272xf32>
    %c0_81 = arith.constant 0 : index
    %c0_82 = arith.constant 0 : index
    %54 = vector.load %arg5[%c0_81, %c0_82] : memref<16x1xf32, #tpu.memory_space<vmem>>, vector<16x1xf32>
    %55 = vector.broadcast %54 : vector<16x1xf32> to vector<16x272xf32>
    %56 = arith.addf %53, %55 : vector<16x272xf32>
    %cst_83 = arith.constant 0.000000e+00 : f32
    %57 = vector.broadcast %cst_83 : f32 to vector<16x272xf32>
    %58 = arith.maximumf %56, %57 : vector<16x272xf32>
    %59 = arith.truncf %58 : vector<16x272xf32> to vector<16x272xbf16>
    %c0_84 = arith.constant 0 : index
    %c0_85 = arith.constant 0 : index
    %c0_86 = arith.constant 0 : index
    %c0_87 = arith.constant 0 : index
    %60 = vector.load %arg6[%c0_84, %c0_85, %c0_86, %c0_87] : memref<1x1x16x272xbf16, #tpu.memory_space<vmem>>, vector<1x1x16x272xbf16>
    %61 = vector.shape_cast %60 : vector<1x1x16x272xbf16> to vector<16x272xbf16>
    %62 = vector.shape_cast %59 : vector<16x272xbf16> to vector<1x1x16x272xbf16>
    tpu.vector_store %arg6[%c0_84, %c0_85, %c0_86, %c0_87], %62 {strides = array<i32>} : memref<1x1x16x272xbf16, #tpu.memory_space<vmem>>, vector<1x1x16x272xbf16>,
    return
  }
  func.func @transform_0(%arg0: i32, %arg1: i32) -> (i32, i32, i32, i32) {
    %c0_i32 = arith.constant 0 : i32
    %c0_i32_0 = arith.constant 0 : i32
    %c0_i32_1 = arith.constant 0 : i32
    return %arg0, %arg1, %c0_i32, %c0_i32_0 : i32, i32, i32, i32
  }
  func.func @transform_1(%arg0: i32, %arg1: i32) -> (i32, i32, i32, i32) {
    %c1_i32 = arith.constant 1 : i32
    %0 = arith.addi %arg1, %c1_i32 : i32
    %c0_i32 = arith.constant 0 : i32
    %c0_i32_0 = arith.constant 0 : i32
    %c0_i32_1 = arith.constant 0 : i32
    return %arg0, %0, %c0_i32, %c0_i32_0 : i32, i32, i32, i32
  }
  func.func @transform_2(%arg0: i32, %arg1: i32) -> (i32, i32) {
    %c0_i32 = arith.constant 0 : i32
    %c0_i32_0 = arith.constant 0 : i32
    %c0_i32_1 = arith.constant 0 : i32
    return %c0_i32, %c0_i32_0 : i32, i32
  }
  func.func @transform_3(%arg0: i32, %arg1: i32) -> (i32, i32) {
    %c0_i32 = arith.constant 0 : i32
    %c0_i32_0 = arith.constant 0 : i32
    %c0_i32_1 = arith.constant 0 : i32
    return %c0_i32, %c0_i32_0 : i32, i32
  }
  func.func @transform_4(%arg0: i32, %arg1: i32) -> (i32, i32, i32, i32) {
    %c0_i32 = arith.constant 0 : i32
    %c0_i32_0 = arith.constant 0 : i32
    %c0_i32_1 = arith.constant 0 : i32
    return %arg0, %arg1, %c0_i32, %c0_i32_0 : i32, i32, i32, i32
  }
}

</mosaic_0001>

<llo_original>
// kernel: tile.1
$region0: #{tile.1}
  %s0 = inlined_call_operand.vmem [shape: f32[4,1,1,4], index: 0, kind: input, shape index: {}]
  %s1 = inlined_call_operand.vmem [shape: f32[16,1], index: 1, kind: output, shape index: {}]
  $region1: #{tile.1} parent=0
    #allocation0 [shape = 'u8[4096]{0}', space=vmem, size = 0x1000, scoped, tag = 'scoped mem for input reshape']
    %s3 = sshll.u32 1, 4
    %s4 = ssub.s32 %s3, 1
    %v5 = vld [vmem:[%s0] sm:%s4]
    %6 = vst [vmem:[#allocation0] sm:%s4] %v5
    %v7 = vld [vmem:[#allocation0] sm:$0xf]
    %vm8 = vcmask 7168
    %9 = vst.msk [vmem:[%s1] ss:$4 sm:$0xf] %vm8, %v7
    %v10 = vld [vmem:[#allocation0] sm:$0xf]
    %11 = vrot.lane.b32.xlu0 %v10, 127
    %v12 = vpop.permute.xlu0 %11
    %vm13 = vcmask 7168
    %s14 = scalar_lea.vmem %s1, 1
    %15 = vst.msk [vmem:[%s14] ss:$4 sm:$0xf] %vm13, %v12
    %v16 = vld [vmem:[#allocation0] sm:$0xf]
    %17 = vrot.lane.b32.xlu0 %v16, 126
    %v18 = vpop.permute.xlu0 %17
    %vm19 = vcmask 7168
    %s20 = scalar_lea.vmem %s1, 2
    %21 = vst.msk [vmem:[%s20] ss:$4 sm:$0xf] %vm19, %v18
    %v22 = vld [vmem:[#allocation0] sm:$0xf]
    %23 = vrot.lane.b32.xlu0 %v22, 125
    %v24 = vpop.permute.xlu0 %23
    %vm25 = vcmask 7168
    %s26 = scalar_lea.vmem %s1, 3
    %27 = vst.msk [vmem:[%s26] ss:$4 sm:$0xf] %vm25, %v24

// kernel: tile.14
$region0: #{tile.14}
  #allocation2 [shape = 's32[1]{0}', space=sflag, size = 0x4, scoped, tag = 'scoped memory for tile.14']
  %s0 = inlined_call_operand.hbm [shape: f32[4], index: 0, kind: input, shape index: {}]
  %s1 = inlined_call_operand.vmem [shape: f32[4,1,1,4], index: 1, kind: output, shape index: {}]
  $region1: #{tile.14} parent=0
    #allocation0 [shape = 'u8[512]{0}', space=vmem, size = 0x400, scoped, tag = 'operand span for operand 0']
    #allocation1 [shape = 's32[1]{0}', space=sflag, size = 0x4, scoped, tag = 'scoped memory for tile.14']
    %2 = vsyncpa [#allocation1], 0
    // Predicated region
    $region2: #{tile.14} parent=1 // pred_check
      _
    $region3: #{tile.14} parent=1 // pred_check_branch
      %4 = sbr.rel (0) target = $region5
    $region4: #{tile.14} parent=1 // pred_region
      %s6 = ssub.s32 16, 16
      %7 = vsyncadd [#allocation1], %s6
      %s9 = sshll.u32 [#allocation0], 4
      %s10 = int_to_ptr.vmem [resolvable:$true] %s9
      %12 = dma.hbm_to_vmem [thread:$0]  %s0, 16, %s10, [#allocation1]
    $region5: #{tile.14} parent=1 // pred_fallthru
      _
    // Predicated region
    $region6: #{tile.14} parent=1 // pred_check
      _
    $region7: #{tile.14} parent=1 // pred_check_branch
      %14 = sbr.rel (0) target = $region9
    $region8: #{tile.14} parent=1 // pred_region
      %15 = dma.done [#allocation1], 16
    $region9: #{tile.14} parent=1 // pred_fallthru
      _
    %v16 = vld [vmem:[#allocation0] ss:$0 sm:$0xff]
    %17 = vst [vmem:[%s1] sm:$0xf] %v16
    %18 = vsyncpa [#allocation1], 1

// kernel: tile.10
$region0: #{tile.10}
  #allocation2 [shape = 's32[1]{0}', space=sflag, size = 0x4, scoped, tag = 'scoped memory for tile.10']
  %s0 = inlined_call_operand.hbm [shape: f32[8], index: 0, kind: input, shape index: {}]
  %s1 = inlined_call_operand.vmem [shape: f32[4,1,1,8], index: 1, kind: output, shape index: {}]
  $region1: #{tile.10} parent=0
    #allocation0 [shape = 'u8[512]{0}', space=vmem, size = 0x400, scoped, tag = 'operand span for operand 0']
    #allocation1 [shape = 's32[1]{0}', space=sflag, size = 0x4, scoped, tag = 'scoped memory for tile.10']
    %2 = vsyncpa [#allocation1], 0
    // Predicated region
    $region2: #{tile.10} parent=1 // pred_check
      _
    $region3: #{tile.10} parent=1 // pred_check_branch
      %4 = sbr.rel (0) target = $region5
    $region4: #{tile.10} parent=1 // pred_region
      %s6 = ssub.s32 16, 16
      %7 = vsyncadd [#allocation1], %s6
      %s9 = sshll.u32 [#allocation0], 4
      %s10 = int_to_ptr.vmem [resolvable:$true] %s9
      %12 = dma.hbm_to_vmem [thread:$0]  %s0, 16, %s10, [#allocation1]
    $region5: #{tile.10} parent=1 // pred_fallthru
      _
    // Predicated region
    $region6: #{tile.10} parent=1 // pred_check
      _
    $region7: #{tile.10} parent=1 // pred_check_branch
      %14 = sbr.rel (0) target = $region9
    $region8: #{tile.10} parent=1 // pred_region
      %15 = dma.done [#allocation1], 16
    $region9: #{tile.10} parent=1 // pred_fallthru
      _
    %v16 = vld [vmem:[#allocation0] ss:$0 sm:$0xff]
    %17 = vst [vmem:[%s1] sm:$0xf] %v16
    %18 = vsyncpa [#allocation1], 1

// kernel: tile.0
$region0: #{tile.0}
  %s0 = inlined_call_operand.vmem [shape: f32[4,1,1,8], index: 0, kind: input, shape index: {}]
  %s1 = inlined_call_operand.vmem [shape: f32[32,1], index: 1, kind: output, shape index: {}]
  $region1: #{tile.0} parent=0
    #allocation0 [shape = 'u8[4096]{0}', space=vmem, size = 0x1000, scoped, tag = 'scoped mem for input reshape']
    %s3 = sshll.u32 1, 4
    %s4 = ssub.s32 %s3, 1
    %v5 = vld [vmem:[%s0] sm:%s4]
    %6 = vst [vmem:[#allocation0] sm:%s4] %v5
    %v7 = vld [vmem:[#allocation0] sm:$0xf]
    %vm8 = vcmask 7168
    %9 = vst.msk [vmem:[%s1] ss:$8 sm:$0xf] %vm8, %v7
    %v10 = vld [vmem:[#allocation0] sm:$0xf]
    %11 = vrot.lane.b32.xlu0 %v10, 127
    %v12 = vpop.permute.xlu0 %11
    %vm13 = vcmask 7168
    %s14 = scalar_lea.vmem %s1, 1
    %15 = vst.msk [vmem:[%s14] ss:$8 sm:$0xf] %vm13, %v12
    %v16 = vld [vmem:[#allocation0] sm:$0xf]
    %17 = vrot.lane.b32.xlu0 %v16, 126
    %v18 = vpop.permute.xlu0 %17
    %vm19 = vcmask 7168
    %s20 = scalar_lea.vmem %s1, 2
    %21 = vst.msk [vmem:[%s20] ss:$8 sm:$0xf] %vm19, %v18
    %v22 = vld [vmem:[#allocation0] sm:$0xf]
    %23 = vrot.lane.b32.xlu0 %v22, 125
    %v24 = vpop.permute.xlu0 %23
    %vm25 = vcmask 7168
    %s26 = scalar_lea.vmem %s1, 3
    %27 = vst.msk [vmem:[%s26] ss:$8 sm:$0xf] %vm25, %v24
    %v28 = vld [vmem:[#allocation0] sm:$0xf]
    %29 = vrot.lane.b32.xlu0 %v28, 124
    %v30 = vpop.permute.xlu0 %29
    %vm31 = vcmask 7168
    %s32 = scalar_lea.vmem %s1, 4
    %33 = vst.msk [vmem:[%s32] ss:$8 sm:$0xf] %vm31, %v30
    %v34 = vld [vmem:[#allocation0] sm:$0xf]
    %35 = vrot.lane.b32.xlu0 %v34, 123
    %v36 = vpop.permute.xlu0 %35
    %vm37 = vcmask 7168
    %s38 = scalar_lea.vmem %s1, 5
    %39 = vst.msk [vmem:[%s38] ss:$8 sm:$0xf] %vm37, %v36
    %v40 = vld [vmem:[#allocation0] sm:$0xf]
    %41 = vrot.lane.b32.xlu0 %v40, 122
    %v42 = vpop.permute.xlu0 %41
    %vm43 = vcmask 7168
    %s44 = scalar_lea.vmem %s1, 6
    %45 = vst.msk [vmem:[%s44] ss:$8 sm:$0xf] %vm43, %v42
    %v46 = vld [vmem:[#allocation0] sm:$0xf]
    %47 = vrot.lane.b32.xlu0 %v46, 121
    %v48 = vpop.permute.xlu0 %47
    %vm49 = vcmask 7168
    %s50 = scalar_lea.vmem %s1, 7
    %51 = vst.msk [vmem:[%s50] ss:$8 sm:$0xf] %vm49, %v48

// kernel: _lambda_.2
$region0: #{_lambda_.2}
  #allocation0 [shape = 'u32[]', space=smem, size = 0x4, offset = 0x4, fixed_abs, tag = 'smem constant byte address 0x4 - core index']
  #allocation1 [shape = 'u32[144,128]{1,0:T(1,128)}', space=vmem, size = 0x12000, scoped, tag = 'internal scratch']
  #allocation2 [shape = 'bf16[108,144]{1,0:T(8,128)(2,1)}', space=vmem, size = 0xe000, scoped, tag = 'scratch operand']
  %s0 = inlined_call_operand.vmem [shape: bf16[2,3,12,144], index: 0, kind: input, shape index: {}, may-alias: {0,1}]
  %s1 = inlined_call_operand.vmem [shape: bf16[2,3,12,144], index: 1, kind: input, shape index: {}, may-alias: {0,1}]
  %s2 = inlined_call_operand.vmem [shape: bf16[32,108], index: 2, kind: input, shape index: {}]
  %s3 = inlined_call_operand.vmem [shape: f32[32,1], index: 3, kind: input, shape index: {}]
  %s4 = inlined_call_operand.vmem [shape: bf16[2,2,32,144], index: 4, kind: output, shape index: {}]
  %s5 = sld [smem:[#allocation0]]
  $region49: #{_lambda_.2} parent=0
    _
  %s7 = ssub.s32 1, %s5
  %s8 = scalar_select 0, %s7, %s5
  loop: start=0, step=1, limit=6
  $region2: #{_lambda_.2} parent=0 // loop_pre_header
    _
  $region3: #{_lambda_.2} parent=0 // loop_header
    %s10 = sphi 0, %s14
    %p11 = scmp.ge.s32.totalorder %s10, 6
    %s17 = sphi 0, %s29
    %s18 = sphi 0, %s25
    %s19 = sphi 0, %s17
    %s20 = sphi 0, %s18
    %s21 = sphi 0, %s19
    %s22 = sphi 0, %s20
    %s34 = sphi 0, %s36
    %s37 = sphi 0, %s34
    %s38 = sphi 0, %s37
    %s54 = sphi 0, %s38
    %s64 = sphi 0, %s66
    %s67 = sphi 0, %s64
    %s68 = sphi 0, %s67
    %s84 = sphi 0, %s68
    %s88 = sphi 0, %s88
    %s90 = sphi 0, %s88
    %s91 = sphi 0, %s90
    %s105 = sphi 0, %s91
    %s109 = sphi 0, %s109
    %s111 = sphi 0, %s109
    %s112 = sphi 0, %s111
    %s126 = sphi 0, %s112
    %s134 = sphi 0, %s136
    %s137 = sphi 0, %s134
    %s138 = sphi 0, %s137
    %s154 = sphi 0, %s138
  $region4: #{_lambda_.2} parent=0 // loop_header_branch
    %13 = sbr.rel (%p11) target = $region8
  $region5: #{_lambda_.2} parent=0 // loop_body
    %s15 = ssub.s32 %s10, 1
    %s16 = ssub.s32 %s10, 2
    %s23 = sadd.s32 1, %s18
    %p24 = scmp.ge.s32.totalorder %s23, 2
    %s25 = scalar_select %p24, 0, %s23
    %s26 = sadd.s32 1, %s17
    %s27 = scalar_select %p24, %s26, %s17
    %p28 = scmp.ge.s32.totalorder %s27, 2
    %s29 = scalar_select %p28, 0, %s27
    %s30 = ssub.s32 %s17, %s29
    %s31 = ssub.s32 %s18, %s25
    %s32 = sor.u32 %s30, %s31
    %p33 = scmp.eq.s32.totalorder %s32, 0
    %s35 = sadd.s32 %s34, 1
    %s36 = scalar_select %p33, %s34, %s35
    %p39 = pneg %p33
    %p40 = scmp.eq.s32.totalorder %s10, 3
    %p41 = por %p39, %p40
    %p42 = scmp.ne.s32.totalorder %s34, %s37
    %p43 = scmp.eq.s32.totalorder %s10, 0
    %p44 = por %p42, %p43
    %p45 = scmp.ne.s32.totalorder %s34, %s37
    %p46 = scmp.eq.s32.totalorder %s15, 3
    %p47 = por %p45, %p46
    %p48 = scmp.ne.s32.totalorder %s37, %s38
    %p49 = scmp.eq.s32.totalorder %s15, 0
    %p50 = por %p48, %p49
    %p51 = scmp.ne.s32.totalorder %s37, %s38
    %p52 = scmp.eq.s32.totalorder %s16, 3
    %p53 = por %p51, %p52
    %p55 = scmp.ne.s32.totalorder %s38, %s54
    %p56 = scmp.eq.s32.totalorder %s16, 0
    %p57 = por %p55, %p56
    %s58 = sadd.s32 %s18, 1
    %s59 = sadd.s32 %s25, 1
    %s60 = ssub.s32 %s17, %s29
    %s61 = ssub.s32 %s58, %s59
    %s62 = sor.u32 %s60, %s61
    %p63 = scmp.eq.s32.totalorder %s62, 0
    %s65 = sadd.s32 %s64, 1
    %s66 = scalar_select %p63, %s64, %s65
    %p69 = pneg %p63
    %p70 = scmp.eq.s32.totalorder %s10, 3
    %p71 = por %p69, %p70
    %p72 = scmp.ne.s32.totalorder %s64, %s67
    %p73 = scmp.eq.s32.totalorder %s10, 0
    %p74 = por %p72, %p73
    %p75 = scmp.ne.s32.totalorder %s64, %s67
    %p76 = scmp.eq.s32.totalorder %s15, 3
    %p77 = por %p75, %p76
    %p78 = scmp.ne.s32.totalorder %s67, %s68
    %p79 = scmp.eq.s32.totalorder %s15, 0
    %p80 = por %p78, %p79
    %p81 = scmp.ne.s32.totalorder %s67, %s68
    %p82 = scmp.eq.s32.totalorder %s16, 3
    %p83 = por %p81, %p82
    %p85 = scmp.ne.s32.totalorder %s68, %s84
    %p86 = scmp.eq.s32.totalorder %s16, 0
    %p87 = por %p85, %p86
    %s89 = sadd.s32 %s88, 1
    %p92 = scmp.eq.s32.totalorder %s10, 3
    %p93 = scmp.ne.s32.totalorder %s88, %s90
    %p94 = scmp.eq.s32.totalorder %s10, 0
    %p95 = por %p93, %p94
    %p96 = scmp.ne.s32.totalorder %s88, %s90
    %p97 = scmp.eq.s32.totalorder %s15, 3
    %p98 = por %p96, %p97
    %p99 = scmp.ne.s32.totalorder %s90, %s91
    %p100 = scmp.eq.s32.totalorder %s15, 0
    %p101 = por %p99, %p100
    %p102 = scmp.ne.s32.totalorder %s90, %s91
    %p103 = scmp.eq.s32.totalorder %s16, 3
    %p104 = por %p102, %p103
    %p106 = scmp.ne.s32.totalorder %s91, %s105
    %p107 = scmp.eq.s32.totalorder %s16, 0
    %p108 = por %p106, %p107
    %s110 = sadd.s32 %s109, 1
    %p113 = scmp.eq.s32.totalorder %s10, 3
    %p114 = scmp.ne.s32.totalorder %s109, %s111
    %p115 = scmp.eq.s32.totalorder %s10, 0
    %p116 = por %p114, %p115
    %p117 = scmp.ne.s32.totalorder %s109, %s111
    %p118 = scmp.eq.s32.totalorder %s15, 3
    %p119 = por %p117, %p118
    %p120 = scmp.ne.s32.totalorder %s111, %s112
    %p121 = scmp.eq.s32.totalorder %s15, 0
    %p122 = por %p120, %p121
    %p123 = scmp.ne.s32.totalorder %s111, %s112
    %p124 = scmp.eq.s32.totalorder %s16, 3
    %p125 = por %p123, %p124
    %p127 = scmp.ne.s32.totalorder %s112, %s126
    %p128 = scmp.eq.s32.totalorder %s16, 0
    %p129 = por %p127, %p128
    %s130 = ssub.s32 %s17, %s29
    %s131 = ssub.s32 %s18, %s25
    %s132 = sor.u32 %s130, %s131
    %p133 = scmp.eq.s32.totalorder %s132, 0
    %s135 = sadd.s32 %s134, 1
    %s136 = scalar_select %p133, %s134, %s135
    %p139 = pneg %p133
    %p140 = scmp.eq.s32.totalorder %s10, 3
    %p141 = por %p139, %p140
    %p142 = scmp.ne.s32.totalorder %s134, %s137
    %p143 = scmp.eq.s32.totalorder %s10, 0
    %p144 = por %p142, %p143
    %p145 = scmp.ne.s32.totalorder %s134, %s137
    %p146 = scmp.eq.s32.totalorder %s15, 3
    %p147 = por %p145, %p146
    %p148 = scmp.ne.s32.totalorder %s137, %s138
    %p149 = scmp.eq.s32.totalorder %s15, 0
    %p150 = por %p148, %p149
    %p151 = scmp.ne.s32.totalorder %s137, %s138
    %p152 = scmp.eq.s32.totalorder %s16, 3
    %p153 = por %p151, %p152
    %p155 = scmp.ne.s32.totalorder %s138, %s154
    %p156 = scmp.eq.s32.totalorder %s16, 0
    %p157 = por %p155, %p156
    %p158 = scmp.le.s32.totalorder 1, %s10
    %p159 = scmp.lt.s32.totalorder %s10, 5
    %p160 = pnand %p158, %p159
    %p161 = pneg %p160
    // Predicated region
    $region9: #{_lambda_.2} parent=5 // pred_check
      _
    $region10: #{_lambda_.2} parent=5 // pred_check_branch
      %163 = sbr.rel (%p160) target = $region12
    $region11: #{_lambda_.2} parent=5 // pred_region
      %s164 = ssub.s32 %s10, 1
      // Predicated region
      $region13: #{_lambda_.2} parent=11 // pred_check
        %p165 = pneg %p101
      $region14: #{_lambda_.2} parent=11 // pred_check_branch
        %167 = sbr.rel (%p165) target = $region16
      $region15: #{_lambda_.2} parent=11 // pred_region
        _
      $region16: #{_lambda_.2} parent=11 // pred_fallthru
        _
      // Predicated region
      $region17: #{_lambda_.2} parent=11 // pred_check
        %p168 = pneg %p122
      $region18: #{_lambda_.2} parent=11 // pred_check_branch
        %170 = sbr.rel (%p168) target = $region20
      $region19: #{_lambda_.2} parent=11 // pred_region
        _
      $region20: #{_lambda_.2} parent=11 // pred_fallthru
        _
    $region12: #{_lambda_.2} parent=5 // pred_fallthru
      _
    %p171 = scmp.lt.s32.totalorder %s10, 4
    // Predicated region
    $region21: #{_lambda_.2} parent=5 // pred_check
      %p172 = pneg %p171
    $region22: #{_lambda_.2} parent=5 // pred_check_branch
      %174 = sbr.rel (%p172) target = $region24
    $region23: #{_lambda_.2} parent=5 // pred_region
      // Predicated region
      $region25: #{_lambda_.2} parent=23 // pred_check
        %p175 = pneg %p44
      $region26: #{_lambda_.2} parent=23 // pred_check_branch
        %177 = sbr.rel (%p175) target = $region28
      $region27: #{_lambda_.2} parent=23 // pred_region
        %p178 = scmp.lt.s32.totalorder %s17, 1
        %s179 = scalar_select %p178, %s17, 1
        %p180 = scmp.lt.s32.totalorder %s18, 2
        %s181 = scalar_select %p180, %s18, 2
        %s182 = smul.addr %s181, 4
        %s183 = smul.addr %s179, 12
        %s184 = sadd.s32 %s182, %s183
        %s185 = smul.addr %s184, 4
        %s186 = scalar_lea.vmem %s0, %s185
      $region28: #{_lambda_.2} parent=23 // pred_fallthru
        _
      // Predicated region
      $region29: #{_lambda_.2} parent=23 // pred_check
        %p187 = pneg %p74
      $region30: #{_lambda_.2} parent=23 // pred_check_branch
        %189 = sbr.rel (%p187) target = $region32
      $region31: #{_lambda_.2} parent=23 // pred_region
        %s190 = sadd.s32 %s18, 1
        %p191 = scmp.lt.s32.totalorder %s17, 1
        %s192 = scalar_select %p191, %s17, 1
        %p193 = scmp.lt.s32.totalorder %s190, 2
        %s194 = scalar_select %p193, %s190, 2
        %s195 = smul.addr %s194, 4
        %s196 = smul.addr %s192, 12
        %s197 = sadd.s32 %s195, %s196
        %s198 = smul.addr %s197, 4
        %s199 = scalar_lea.vmem %s1, %s198
        %s200 = sadd.s32 %s18, 1
      $region32: #{_lambda_.2} parent=23 // pred_fallthru
        _
    $region24: #{_lambda_.2} parent=5 // pred_fallthru
      _
    %p201 = scmp.le.s32.totalorder 1, %s10
    %p202 = scmp.lt.s32.totalorder %s10, 5
    %p203 = pnand %p201, %p202
    %p204 = pneg %p203
    // Predicated region
    $region33: #{_lambda_.2} parent=5 // pred_check
      _
    $region34: #{_lambda_.2} parent=5 // pred_check_branch
      %206 = sbr.rel (%p203) target = $region36
    $region35: #{_lambda_.2} parent=5 // pred_region
      %s207 = ssub.s32 %s10, 1
      %p208 = scmp.lt.s32.totalorder %s19, 1
      %s209 = scalar_select %p208, %s19, 1
      %p210 = scmp.lt.s32.totalorder %s20, 2
      %s211 = scalar_select %p210, %s20, 2
      %s212 = smul.addr %s211, 4
      %s213 = smul.addr %s209, 12
      %s214 = sadd.s32 %s212, %s213
      %s215 = smul.addr %s214, 4
      %s216 = scalar_lea.vmem %s0, %s215
      %p217 = pneg %p50
      %p218 = pneg %p47
      %s219 = sadd.s32 %s20, 1
      %p220 = scmp.lt.s32.totalorder %s19, 1
      %s221 = scalar_select %p220, %s19, 1
      %p222 = scmp.lt.s32.totalorder %s219, 2
      %s223 = scalar_select %p222, %s219, 2
      %s224 = smul.addr %s223, 4
      %s225 = smul.addr %s221, 12
      %s226 = sadd.s32 %s224, %s225
      %s227 = smul.addr %s226, 4
      %s228 = scalar_lea.vmem %s1, %s227
      %p229 = pneg %p80
      %p230 = pneg %p77
      %p231 = pneg %p101
      %p232 = pneg %p98
      %p233 = pneg %p122
      %p234 = pneg %p119
      %p235 = pneg %p150
      %p236 = pneg %p147
      %p237 = scmp.lt.s32.totalorder %s19, 1
      %s238 = scalar_select %p237, %s19, 1
      %p239 = scmp.lt.s32.totalorder %s20, 1
      %s240 = scalar_select %p239, %s20, 1
      %s241 = smul.addr %s240, 8
      %s242 = smul.addr %s238, 16
      %s243 = sadd.s32 %s241, %s242
      %s244 = smul.addr %s243, 4
      %s245 = scalar_lea.vmem %s4, %s244
      %p246 = scmp.lt.s32.totalorder %s19, 1
      %s247 = scalar_select %p246, %s19, 1
      %p248 = scmp.lt.s32.totalorder %s20, 2
      %s249 = scalar_select %p248, %s20, 2
      %s250 = smul.addr %s249, 4
      %s251 = smul.addr %s247, 12
      %s252 = sadd.s32 %s250, %s251
      %s253 = smul.addr %s252, 4
      %s254 = scalar_lea.vmem %s0, %s253
      %s255 = sadd.s32 %s20, 1
      %p256 = scmp.lt.s32.totalorder %s19, 1
      %s257 = scalar_select %p256, %s19, 1
      %p258 = scmp.lt.s32.totalorder %s255, 2
      %s259 = scalar_select %p258, %s255, 2
      %s260 = smul.addr %s259, 4
      %s261 = smul.addr %s257, 12
      %s262 = sadd.s32 %s260, %s261
      %s263 = smul.addr %s262, 4
      %s264 = scalar_lea.vmem %s1, %s263
      %s265 = sadd.s32 %s20, 1
      %p266 = scmp.lt.s32.totalorder %s19, 1
      %s267 = scalar_select %p266, %s19, 1
      %p268 = scmp.lt.s32.totalorder %s20, 1
      %s269 = scalar_select %p268, %s20, 1
      %s270 = smul.addr %s269, 8
      %s271 = smul.addr %s267, 16
      %s272 = sadd.s32 %s270, %s271
      %s273 = smul.addr %s272, 4
      %s274 = scalar_lea.vmem %s4, %s273
      %v276 = vld [vmem:[%s254] sm:$0xff]
      %v277 = vld [vmem:[%s254 + $0x8] sm:$0x33]
      %vm278 = vcmask 1043456
      %vm279 = vcmask 130052
      %vm280 = vmor %vm279, %vm278
      %281 = vst.msk [vmem:[#allocation2] sm:$0xff] %vm280, %v276
      %vm282 = vcmask 1041408
      %vm283 = vcmask 128004
      %vm284 = vmor %vm283, %vm282
      %285 = vst.msk [vmem:[#allocation2 + $0x8] sm:$0x33] %vm284, %v277
      %v286 = vld [vmem:[%s254] sm:$0xff]
      %v287 = vld [vmem:[%s254 + $0x8] sm:$0x33]
      %vm290 = vcmask 1041408
      %vm291 = vcmask 1045508
      %vm292 = vmor %vm290, %vm291
      %v293 = vrot.slane %v286, 6
      %v294 = vrot.slane %v293, 4
      %v295 = vrot.slane %v287, 6
      %v296 = vsel %vm292, %v294, %v295
      %297 = vrot.lane.b32.xlu0 %v293, 127
      %v298 = vpop.permute.xlu0 %297
      %299 = vrot.lane.b32.xlu0 %v296, 127
      %v300 = vpop.permute.xlu0 %299
      %v301 = vrot.slane %v298, 4
      %v302 = vrot.slane %v300, 4
      %vm303 = vcmask 1039360
      %v304 = vsel %vm303, %v298, %v301
      %v305 = vsel %vm303, %v300, %v302
      %vm308 = vcmask 1043458
      %vm309 = vcmask 121862
      %vm310 = vmor %vm309, %vm308
      %311 = vst.msk [vmem:[#allocation2 + $0x8] sm:$0xcc] %vm310, %v304
      %vm312 = vcmask 121860
      %vm313 = vmor %vm312, %vm278
      %314 = vst.msk [vmem:[#allocation2 + $0x10] sm:$0xff] %vm313, %v305
      %v315 = vld [vmem:[%s264] sm:$0xf]
      %v316 = vld [vmem:[%s264 + $0x8] sm:$0x3]
      %v319 = vrot.slane %v315, 6
      %v320 = vrot.slane %v319, 4
      %v321 = vrot.slane %v316, 6
      %v322 = vsel %vm292, %v320, %v321
      %323 = vrot.lane.b32.xlu0 %v319, 15
      %v324 = vpop.permute.xlu0 %323
      %325 = vrot.lane.b32.xlu0 %v322, 15
      %v326 = vpop.permute.xlu0 %325
      %vm329 = vcmask 126074
      %330 = vst.msk [vmem:[#allocation2 + $0xc] sm:$0xc] %vm329, %v324
      %vm331 = vcmask 126072
      %332 = vst.msk [vmem:[#allocation2 + $0x14] sm:$0xf] %vm331, %v326
      %v333 = vld [vmem:[%s254] sm:$0xff]
      %v334 = vld [vmem:[%s254 + $0x8] sm:$0x33]
      %337 = vrot.lane.b32.xlu0 %v333, 126
      %v338 = vpop.permute.xlu0 %337
      %339 = vrot.lane.b32.xlu0 %v334, 126
      %v340 = vpop.permute.xlu0 %339
      %v341 = vrot.slane %v338, 4
      %v342 = vrot.slane %v340, 4
      %vm343 = vcmask 1031168
      %v344 = vsel %vm343, %v338, %v341
      %v345 = vsel %vm343, %v340, %v342
      %vm348 = vcmask 113668
      %vm349 = vmor %vm348, %vm278
      %350 = vst.msk [vmem:[#allocation2 + $0x18] sm:$0xff] %vm349, %v344
      %vm351 = vcmask 111620
      %vm352 = vmor %vm351, %vm282
      %353 = vst.msk [vmem:[#allocation2 + $0x20] sm:$0x33] %vm352, %v345
      %v354 = vld [vmem:[%s264] sm:$0xf]
      %v355 = vld [vmem:[%s264 + $0x8] sm:$0x3]
      %358 = vrot.lane.b32.xlu0 %v354, 14
      %v359 = vpop.permute.xlu0 %358
      %360 = vrot.lane.b32.xlu0 %v355, 14
      %v361 = vpop.permute.xlu0 %360
      %vm364 = vcmask 126064
      %365 = vst.msk [vmem:[#allocation2 + $0x1c] sm:$0xf] %vm364, %v359
      %vm366 = vcmask 124016
      %367 = vst.msk [vmem:[#allocation2 + $0x24] sm:$0x3] %vm366, %v361
      %v368 = vld [vmem:[%s254] sm:$0xff]
      %v369 = vld [vmem:[%s254 + $0x8] sm:$0x33]
      %v372 = vrot.slane %v368, 6
      %v373 = vrot.slane %v372, 4
      %v374 = vrot.slane %v369, 6
      %v375 = vsel %vm292, %v373, %v374
      %376 = vrot.lane.b32.xlu0 %v372, 110
      %v377 = vpop.permute.xlu0 %376
      %378 = vrot.lane.b32.xlu0 %v375, 110
      %v379 = vpop.permute.xlu0 %378
      %v380 = vrot.slane %v377, 4
      %v381 = vrot.slane %v379, 4
      %vm382 = vcmask 900096
      %v383 = vsel %vm382, %v377, %v380
      %v384 = vsel %vm382, %v379, %v381
      %vm387 = vcmask 1027074
      %388 = vst.msk [vmem:[#allocation2 + $0x20] sm:$0xc] %vm387, %v383
      %vm389 = vcmask 1027072
      %390 = vst.msk [vmem:[#allocation2 + $0x28] sm:$0xf] %vm389, %v384
      %v391 = vld [vmem:[%s264] sm:$0xf]
      %v392 = vld [vmem:[%s264 + $0x8] sm:$0x3]
      %v395 = vrot.slane %v391, 6
      %v396 = vrot.slane %v395, 4
      %v397 = vrot.slane %v392, 6
      %v398 = vsel %vm292, %v396, %v397
      %399 = vrot.lane.b32.xlu0 %v395, 126
      %v400 = vpop.permute.xlu0 %399
      %401 = vrot.lane.b32.xlu0 %v398, 126
      %v402 = vpop.permute.xlu0 %401
      %v403 = vrot.slane %v400, 4
      %v404 = vrot.slane %v402, 4
      %v405 = vsel %vm343, %v403, %v400
      %v406 = vsel %vm343, %v404, %v402
      %vm409 = vcmask 1044466
      %vm410 = vcmask 130054
      %vm411 = vmor %vm410, %vm409
      %412 = vst.msk [vmem:[#allocation2 + $0x20] sm:$0xcc] %vm411, %v405
      %vm413 = vcmask 1044464
      %vm414 = vmor %vm279, %vm413
      %415 = vst.msk [vmem:[#allocation2 + $0x28] sm:$0xff] %vm414, %v406
      %v416 = vld [vmem:[%s254] sm:$0xff]
      %v417 = vld [vmem:[%s254 + $0x8] sm:$0x33]
      %420 = vrot.lane.b32.xlu0 %v416, 109
      %v421 = vpop.permute.xlu0 %420
      %422 = vrot.lane.b32.xlu0 %v417, 109
      %v423 = vpop.permute.xlu0 %422
      %v424 = vrot.slane %v421, 4
      %v425 = vrot.slane %v423, 4
      %vm426 = vcmask 891904
      %v427 = vsel %vm426, %v421, %v424
      %v428 = vsel %vm426, %v423, %v425
      %vm431 = vcmask 1018880
      %432 = vst.msk [vmem:[#allocation2 + $0x30] sm:$0xf] %vm431, %v427
      %vm433 = vcmask 1016832
      %434 = vst.msk [vmem:[#allocation2 + $0x38] sm:$0x3] %vm433, %v428
      %v435 = vld [vmem:[%s264] sm:$0xf]
      %v436 = vld [vmem:[%s264 + $0x8] sm:$0x3]
      %439 = vrot.lane.b32.xlu0 %v435, 125
      %v440 = vpop.permute.xlu0 %439
      %441 = vrot.lane.b32.xlu0 %v436, 125
      %v442 = vpop.permute.xlu0 %441
      %v443 = vrot.slane %v440, 4
      %v444 = vrot.slane %v442, 4
      %vm445 = vcmask 1022976
      %v446 = vsel %vm445, %v443, %v440
      %v447 = vsel %vm445, %v444, %v442
      %vm450 = vcmask 1044456
      %vm451 = vmor %vm279, %vm450
      %452 = vst.msk [vmem:[#allocation2 + $0x30] sm:$0xff] %vm451, %v446
      %vm453 = vcmask 1042408
      %vm454 = vmor %vm283, %vm453
      %455 = vst.msk [vmem:[#allocation2 + $0x38] sm:$0x33] %vm454, %v447
      %v456 = vld [vmem:[%s254] sm:$0xff]
      %v457 = vld [vmem:[%s254 + $0x8] sm:$0x33]
      %v460 = vrot.slane %v456, 6
      %v461 = vrot.slane %v460, 4
      %v462 = vrot.slane %v457, 6
      %v463 = vsel %vm292, %v461, %v462
      %464 = vrot.lane.b32.xlu0 %v460, 108
      %v465 = vpop.permute.xlu0 %464
      %466 = vrot.lane.b32.xlu0 %v463, 108
      %v467 = vpop.permute.xlu0 %466
      %v468 = vrot.slane %v465, 4
      %v469 = vrot.slane %v467, 4
      %vm470 = vcmask 883712
      %v471 = vsel %vm470, %v465, %v468
      %v472 = vsel %vm470, %v467, %v469
      %vm475 = vcmask 1010690
      %476 = vst.msk [vmem:[#allocation2 + $0x38] sm:$0xc] %vm475, %v471
      %vm477 = vcmask 1010688
      %478 = vst.msk [vmem:[#allocation2 + $0x40] sm:$0xf] %vm477, %v472
      %v479 = vld [vmem:[%s264] sm:$0xf]
      %v480 = vld [vmem:[%s264 + $0x8] sm:$0x3]
      %v483 = vrot.slane %v479, 6
      %v484 = vrot.slane %v483, 4
      %v485 = vrot.slane %v480, 6
      %v486 = vsel %vm292, %v484, %v485
      %487 = vrot.lane.b32.xlu0 %v483, 124
      %v488 = vpop.permute.xlu0 %487
      %489 = vrot.lane.b32.xlu0 %v486, 124
      %v490 = vpop.permute.xlu0 %489
      %v491 = vrot.slane %v488, 4
      %v492 = vrot.slane %v490, 4
      %vm493 = vcmask 1014784
      %v494 = vsel %vm493, %v491, %v488
      %v495 = vsel %vm493, %v492, %v490
      %vm498 = vcmask 1044450
      %vm499 = vmor %vm410, %vm498
      %500 = vst.msk [vmem:[#allocation2 + $0x38] sm:$0xcc] %vm499, %v494
      %vm501 = vcmask 1044448
      %vm502 = vmor %vm279, %vm501
      %503 = vst.msk [vmem:[#allocation2 + $0x40] sm:$0xff] %vm502, %v495
      %v504 = vld [vmem:[%s254] sm:$0xff]
      %v505 = vld [vmem:[%s254 + $0x8] sm:$0x33]
      %508 = vrot.lane.b32.xlu0 %v504, 92
      %v509 = vpop.permute.xlu0 %508
      %510 = vrot.lane.b32.xlu0 %v505, 92
      %v511 = vpop.permute.xlu0 %510
      %v512 = vrot.slane %v509, 4
      %v513 = vrot.slane %v511, 4
      %vm514 = vcmask 752640
      %v515 = vsel %vm514, %v509, %v512
      %v516 = vsel %vm514, %v511, %v513
      %vm519 = vcmask 879616
      %520 = vst.msk [vmem:[#allocation2 + $0x48] sm:$0xf] %vm519, %v515
      %vm521 = vcmask 877568
      %522 = vst.msk [vmem:[#allocation2 + $0x50] sm:$0x3] %vm521, %v516
      %v523 = vld [vmem:[%s264] sm:$0xf]
      %v524 = vld [vmem:[%s264 + $0x8] sm:$0x3]
      %527 = vrot.lane.b32.xlu0 %v523, 108
      %v528 = vpop.permute.xlu0 %527
      %529 = vrot.lane.b32.xlu0 %v524, 108
      %v530 = vpop.permute.xlu0 %529
      %v531 = vrot.slane %v528, 4
      %v532 = vrot.slane %v530, 4
      %v533 = vsel %vm470, %v531, %v528
      %v534 = vsel %vm470, %v532, %v530
      %vm537 = vcmask 1044320
      %vm538 = vmor %vm279, %vm537
      %539 = vst.msk [vmem:[#allocation2 + $0x48] sm:$0xff] %vm538, %v533
      %vm540 = vcmask 1042272
      %vm541 = vmor %vm283, %vm540
      %542 = vst.msk [vmem:[#allocation2 + $0x50] sm:$0x33] %vm541, %v534
      %v543 = vld [vmem:[%s254] sm:$0xff]
      %v544 = vld [vmem:[%s254 + $0x8] sm:$0x33]
      %v547 = vrot.slane %v543, 6
      %v548 = vrot.slane %v547, 4
      %v549 = vrot.slane %v544, 6
      %v550 = vsel %vm292, %v548, %v549
      %551 = vrot.lane.b32.xlu0 %v547, 91
      %v552 = vpop.permute.xlu0 %551
      %553 = vrot.lane.b32.xlu0 %v550, 91
      %v554 = vpop.permute.xlu0 %553
      %v555 = vrot.slane %v552, 4
      %v556 = vrot.slane %v554, 4
      %vm557 = vcmask 744448
      %v558 = vsel %vm557, %v552, %v555
      %v559 = vsel %vm557, %v554, %v556
      %vm562 = vcmask 871426
      %563 = vst.msk [vmem:[#allocation2 + $0x50] sm:$0xc] %vm562, %v558
      %vm564 = vcmask 871424
      %565 = vst.msk [vmem:[#allocation2 + $0x58] sm:$0xf] %vm564, %v559
      %v566 = vld [vmem:[%s264] sm:$0xf]
      %v567 = vld [vmem:[%s264 + $0x8] sm:$0x3]
      %v570 = vrot.slane %v566, 6
      %v571 = vrot.slane %v570, 4
      %v572 = vrot.slane %v567, 6
      %v573 = vsel %vm292, %v571, %v572
      %574 = vrot.lane.b32.xlu0 %v570, 107
      %v575 = vpop.permute.xlu0 %574
      %576 = vrot.lane.b32.xlu0 %v573, 107
      %v577 = vpop.permute.xlu0 %576
      %v578 = vrot.slane %v575, 4
      %v579 = vrot.slane %v577, 4
      %vm580 = vcmask 875520
      %v581 = vsel %vm580, %v578, %v575
      %v582 = vsel %vm580, %v579, %v577
      %vm585 = vcmask 1044314
      %vm586 = vmor %vm410, %vm585
      %587 = vst.msk [vmem:[#allocation2 + $0x50] sm:$0xcc] %vm586, %v581
      %vm588 = vcmask 1044312
      %vm589 = vmor %vm279, %vm588
      %590 = vst.msk [vmem:[#allocation2 + $0x58] sm:$0xff] %vm589, %v582
      %v591 = vld [vmem:[%s254] sm:$0xff]
      %v592 = vld [vmem:[%s254 + $0x8] sm:$0x33]
      %595 = vrot.lane.b32.xlu0 %v591, 90
      %v596 = vpop.permute.xlu0 %595
      %597 = vrot.lane.b32.xlu0 %v592, 90
      %v598 = vpop.permute.xlu0 %597
      %v599 = vrot.slane %v596, 4
      %v600 = vrot.slane %v598, 4
      %vm601 = vcmask 736256
      %v602 = vsel %vm601, %v596, %v599
      %v603 = vsel %vm601, %v598, %v600
      %vm606 = vcmask 863232
      %607 = vst.msk [vmem:[#allocation2 + $0x60] sm:$0xf] %vm606, %v602
      %vm608 = vcmask 861184
      %609 = vst.msk [vmem:[#allocation2 + $0x68] sm:$0x3] %vm608, %v603
      %v610 = vld [vmem:[%s264] sm:$0xf]
      %v611 = vld [vmem:[%s264 + $0x8] sm:$0x3]
      %614 = vrot.lane.b32.xlu0 %v610, 106
      %v615 = vpop.permute.xlu0 %614
      %616 = vrot.lane.b32.xlu0 %v611, 106
      %v617 = vpop.permute.xlu0 %616
      %v618 = vrot.slane %v615, 4
      %v619 = vrot.slane %v617, 4
      %vm620 = vcmask 867328
      %v621 = vsel %vm620, %v618, %v615
      %v622 = vsel %vm620, %v619, %v617
      %vm625 = vcmask 1044304
      %vm626 = vmor %vm279, %vm625
      %627 = vst.msk [vmem:[#allocation2 + $0x60] sm:$0xff] %vm626, %v621
      %vm628 = vcmask 1042256
      %vm629 = vmor %vm283, %vm628
      %630 = vst.msk [vmem:[#allocation2 + $0x68] sm:$0x33] %vm629, %v622
      %v631 = vld [vmem:[%s2] sm:$0xf]
      %v632 = vld [vmem:[%s2 + $0x4] sm:$0xf]
      %v633 = vld [vmem:[%s2 + $0x8] sm:$0xf]
      %v634 = vld [vmem:[%s2 + $0xc] sm:$0xf]
      %v635 = vld [vmem:[#allocation2] sm:$0xff]
      %v636 = vld [vmem:[#allocation2 + $0x8] sm:$0xff]
      %v637 = vld [vmem:[#allocation2 + $0x10] sm:$0xff]
      %v638 = vld [vmem:[#allocation2 + $0x18] sm:$0xff]
      %v639 = vld [vmem:[#allocation2 + $0x20] sm:$0xff]
      %v640 = vld [vmem:[#allocation2 + $0x28] sm:$0xff]
      %v641 = vld [vmem:[#allocation2 + $0x30] sm:$0xff]
      %v642 = vld [vmem:[#allocation2 + $0x38] sm:$0xff]
      %v643 = vld [vmem:[#allocation2 + $0x40] sm:$0xff]
      %v644 = vld [vmem:[#allocation2 + $0x48] sm:$0xff]
      %v645 = vld [vmem:[#allocation2 + $0x50] sm:$0xff]
      %v646 = vld [vmem:[#allocation2 + $0x58] sm:$0xff]
      %v647 = vld [vmem:[#allocation2 + $0x60] sm:$0xff]
      %v648 = vld [vmem:[#allocation2 + $0x68] sm:$0x33]
      %v649 = vld [vmem:[%s3] sm:$0xff]
      %v650 = vld [vmem:[%s3 + $0x8] sm:$0xff]
      %v651 = vld [vmem:[%s3 + $0x10] sm:$0xff]
      %v652 = vld [vmem:[%s3 + $0x18] sm:$0xff]
      %654 = vset.pattern.permute.xlu0 0
      %655 = vperm.xlu0 %654, %v649
      %v656 = vpop.permute.xlu0 %655
      %659 = vset.pattern.permute.xlu0 0
      %660 = vperm.xlu0 %659, %v650
      %v661 = vpop.permute.xlu0 %660
      %664 = vset.pattern.permute.xlu0 0
      %665 = vperm.xlu0 %664, %v651
      %v666 = vpop.permute.xlu0 %665
      %669 = vset.pattern.permute.xlu0 0
      %670 = vperm.xlu0 %669, %v652
      %v671 = vpop.permute.xlu0 %670
      %v677 = vunpack.c.l.b16 %v631
      %v678 = vunpack.c.l.b16 %v632
      %v679 = vunpack.c.l.b16 %v633
      %v680 = vunpack.c.l.b16 %v634
      %v681 = vpack.c.b16 %v678, %v677
      %v682 = vpack.c.b16 %v680, %v679
      %v697 = vunpack.c.l.b16 %v635
      %v698 = vunpack.c.h.b16 %v635
      %v699 = vunpack.c.l.b16 %v636
      %v700 = vunpack.c.h.b16 %v636
      %v701 = vunpack.c.l.b16 %v637
      %v702 = vunpack.c.h.b16 %v637
      %v703 = vunpack.c.l.b16 %v638
      %v704 = vunpack.c.h.b16 %v638
      %v705 = vunpack.c.l.b16 %v639
      %v706 = vunpack.c.h.b16 %v639
      %v707 = vunpack.c.l.b16 %v640
      %v708 = vunpack.c.h.b16 %v640
      %v709 = vunpack.c.l.b16 %v641
      %v710 = vunpack.c.h.b16 %v641
      %v711 = vunpack.c.l.b16 %v642
      %v712 = vunpack.c.h.b16 %v642
      %v713 = vunpack.c.l.b16 %v643
      %v714 = vunpack.c.h.b16 %v643
      %v715 = vunpack.c.l.b16 %v644
      %v716 = vunpack.c.h.b16 %v644
      %v717 = vunpack.c.l.b16 %v645
      %v718 = vunpack.c.h.b16 %v645
      %v719 = vunpack.c.l.b16 %v646
      %v720 = vunpack.c.h.b16 %v646
      %v721 = vunpack.c.l.b16 %v647
      %v722 = vunpack.c.h.b16 %v647
      %v723 = vunpack.c.l.b16 %v648
      %v724 = vunpack.c.h.b16 %v648
      %v725 = vpack.c.b16 %v699, %v697
      %v726 = vpack.c.b16 %v700, %v698
      %v727 = vpack.c.b16 %v703, %v701
      %v728 = vpack.c.b16 %v704, %v702
      %v729 = vpack.c.b16 %v707, %v705
      %v730 = vpack.c.b16 %v708, %v706
      %v731 = vpack.c.b16 %v711, %v709
      %v732 = vpack.c.b16 %v712, %v710
      %v733 = vpack.c.b16 %v715, %v713
      %v734 = vpack.c.b16 %v716, %v714
      %v735 = vpack.c.b16 %v719, %v717
      %v736 = vpack.c.b16 %v720, %v718
      %v737 = vpack.c.b16 %v723, %v721
      %v738 = vpack.c.b16 %v724, %v722
      %vm751 = vcmask 883712
      %v753 = vsel %vm751, %v681, 0
      %v756 = vsel %vm751, %v682, 0
      %vm758 = vcmask 1045504
      %v760 = vsel %vm758, %v737, 0
      %v763 = vsel %vm758, %v738, 0
      %765 = vmatprep.subr.bf16.mxu0 0
      %766 = vmatpush1.bf16.msra.mxu0 0
      %767 = vmatprep.subr.bf16.mxu0 %v763
      %768 = vmatpush1.bf16.msra.mxu0 %v760
      %769 = vmatprep.subr.bf16.mxu0 %v736
      %770 = vmatpush1.bf16.msra.mxu0 %v735
      %771 = vmatprep.subr.bf16.mxu0 %v734
      %772 = vmatpush1.bf16.msra.mxu0 %v733
      %773 = vmatprep.subr.bf16.mxu0 %v732
      %774 = vmatpush1.bf16.msra.mxu0 %v731
      %775 = vmatprep.subr.bf16.mxu0 %v730
      %776 = vmatpush1.bf16.msra.mxu0 %v729
      %777 = vmatprep.subr.bf16.mxu0 %v728
      %778 = vmatpush1.bf16.msra.mxu0 %v727
      %779 = vmatprep.subr.bf16.mxu0 %v726
      %780 = vmatpush1.bf16.msra.mxu0 %v725
      %781 = vmatprep.subr.bf16.mxu0 0
      %782 = vmatpush2.bf16.msra.mxu0 0
      %783 = vmatprep.subr.bf16.mxu0 0
      %784 = vmatpush2.bf16.msra.mxu0 0
      %785 = vmatprep.subr.bf16.mxu0 0
      %786 = vmatpush2.bf16.msra.mxu0 0
      %787 = vmatprep.subr.bf16.mxu0 0
      %788 = vmatpush2.bf16.msra.mxu0 0
      %789 = vmatprep.subr.bf16.mxu0 0
      %790 = vmatpush2.bf16.msra.mxu0 0
      %791 = vmatprep.subr.bf16.mxu0 0
      %792 = vmatpush2.bf16.msra.mxu0 0
      %793 = vmatprep.subr.bf16.mxu0 0
      %794 = vmatpush2.bf16.msra.mxu0 0
      %795 = vmatprep.subr.bf16.mxu0 0
      %796 = vmatpush2.bf16.msra.mxu0 0
      %797 = vmatprep.mubr.bf16.mxu0 0
      %798 = vmatmul.mubr.bf16.gmra.mxu0 %v753
      %v799 = vpop.f32.mrf.mxu0
      %v800 = vadd.f32 %v656, %v799
      %v801 = vpop.f32.mrf.mxu0
      %v802 = vadd.f32 %v656, %v801
      %v803 = vpop.f32.mrf.mxu0
      %v804 = vadd.f32 %v661, %v803
      %v805 = vpop.f32.mrf.mxu0
      %v806 = vadd.f32 %v661, %v805
      %807 = vmatprep.mubr.bf16.mxu0 0
      %808 = vmatmul.mubr.bf16.gmra.mxu0 %v756
      %v809 = vpop.f32.mrf.mxu0
      %v810 = vadd.f32 %v666, %v809
      %v811 = vpop.f32.mrf.mxu0
      %v812 = vadd.f32 %v666, %v811
      %v813 = vpop.f32.mrf.mxu0
      %v814 = vadd.f32 %v671, %v813
      %v815 = vpop.f32.mrf.mxu0
      %v816 = vadd.f32 %v671, %v815
      %817 = vdwg.mxu0
      %v818 = vmax.f32 %v800, 0.0
      %v819 = vmax.f32 %v802, 0.0
      %v820 = vmax.f32 %v804, 0.0
      %v821 = vmax.f32 %v806, 0.0
      %v822 = vmax.f32 %v810, 0.0
      %v823 = vmax.f32 %v812, 0.0
      %v824 = vmax.f32 %v814, 0.0
      %v825 = vmax.f32 %v816, 0.0
      %v826 = vpack.c.bf16 %v820, %v818
      %v827 = vpack.c.bf16 %v821, %v819
      %v828 = vpack.c.bf16 %v824, %v822
      %v829 = vpack.c.bf16 %v825, %v823
      %v834 = vunpack.c.l.b16 %v826
      %v835 = vunpack.c.l.b16 %v827
      %v836 = vunpack.c.h.b16 %v826
      %v837 = vunpack.c.h.b16 %v827
      %v838 = vunpack.c.l.b16 %v828
      %v839 = vunpack.c.l.b16 %v829
      %v840 = vunpack.c.h.b16 %v828
      %v841 = vunpack.c.h.b16 %v829
      %v842 = vpack.c.b16 %v835, %v834
      %v843 = vpack.c.b16 %v837, %v836
      %v844 = vpack.c.b16 %v839, %v838
      %v845 = vpack.c.b16 %v841, %v840
      %850 = vst.msk [vmem:[%s274] sm:$0xff] %vm280, %v842
      %851 = vst.msk [vmem:[%s274 + $0x8] sm:$0xff] %vm280, %v843
      %852 = vst.msk [vmem:[%s274 + $0x10] sm:$0xff] %vm280, %v844
      %853 = vst.msk [vmem:[%s274 + $0x18] sm:$0xff] %vm280, %v845
      %p854 = scmp.lt.s32.totalorder %s19, 1
      %s855 = scalar_select %p854, %s19, 1
      %p856 = scmp.lt.s32.totalorder %s20, 1
      %s857 = scalar_select %p856, %s20, 1
      %s858 = smul.addr %s857, 8
      %s859 = smul.addr %s855, 16
      %s860 = sadd.s32 %s858, %s859
      %s861 = smul.addr %s860, 4
      %s862 = scalar_lea.vmem %s4, %s861
      // Predicated region
      $region37: #{_lambda_.2} parent=35 // pred_check
        %p863 = pneg %p147
      $region38: #{_lambda_.2} parent=35 // pred_check_branch
        %865 = sbr.rel (%p863) target = $region40
      $region39: #{_lambda_.2} parent=35 // pred_region
        _
      $region40: #{_lambda_.2} parent=35 // pred_fallthru
        _
    $region36: #{_lambda_.2} parent=5 // pred_fallthru
      _
    %p866 = scmp.le.s32.totalorder 2, %s10
    // Predicated region
    $region41: #{_lambda_.2} parent=5 // pred_check
      %p867 = pneg %p866
    $region42: #{_lambda_.2} parent=5 // pred_check_branch
      %869 = sbr.rel (%p867) target = $region44
    $region43: #{_lambda_.2} parent=5 // pred_region
      %s870 = ssub.s32 %s10, 2
      // Predicated region
      $region45: #{_lambda_.2} parent=43 // pred_check
        %p871 = pneg %p153
      $region46: #{_lambda_.2} parent=43 // pred_check_branch
        %873 = sbr.rel (%p871) target = $region48
      $region47: #{_lambda_.2} parent=43 // pred_region
        %p874 = scmp.lt.s32.totalorder %s21, 1
        %s875 = scalar_select %p874, %s21, 1
        %p876 = scmp.lt.s32.totalorder %s22, 1
        %s877 = scalar_select %p876, %s22, 1
        %s878 = smul.addr %s877, 8
        %s879 = smul.addr %s875, 16
        %s880 = sadd.s32 %s878, %s879
        %s881 = smul.addr %s880, 4
        %s882 = scalar_lea.vmem %s4, %s881
      $region48: #{_lambda_.2} parent=43 // pred_fallthru
        _
    $region44: #{_lambda_.2} parent=5 // pred_fallthru
      _
  $region6: #{_lambda_.2} parent=0 // loop_footer
    %s14 = sadd.s32 1, %s10
  $region7: #{_lambda_.2} parent=0 // loop_footer_branch
    %9 = sbr.rel target = $region3
  $region8: #{_lambda_.2} parent=0 // loop_exit
    _

// kernel: _lambda_.3
$region0: #{_lambda_.3}
  #allocation0 [shape = 'u32[]', space=smem, size = 0x4, offset = 0x4, fixed_abs, tag = 'smem constant byte address 0x4 - core index']
  #allocation1 [shape = 'u32[144,128]{1,0:T(1,128)}', space=vmem, size = 0x12000, scoped, tag = 'internal scratch']
  #allocation2 [shape = 'bf16[72,272]{1,0:T(8,128)(2,1)}', space=vmem, size = 0xd800, scoped, tag = 'scratch operand']
  %s0 = inlined_call_operand.vmem [shape: bf16[2,5,8,272], index: 0, kind: input, shape index: {}, may-alias: {0,1}]
  %s1 = inlined_call_operand.vmem [shape: bf16[2,5,8,272], index: 1, kind: input, shape index: {}, may-alias: {0,1}]
  %s2 = inlined_call_operand.vmem [shape: bf16[16,72], index: 2, kind: input, shape index: {}]
  %s3 = inlined_call_operand.vmem [shape: f32[16,1], index: 3, kind: input, shape index: {}]
  %s4 = inlined_call_operand.vmem [shape: bf16[2,4,16,272], index: 4, kind: output, shape index: {}]
  %s5 = sld [smem:[#allocation0]]
  $region49: #{_lambda_.3} parent=0
    _
  %s7 = ssub.s32 1, %s5
  %s8 = scalar_select 0, %s7, %s5
  loop: start=0, step=1, limit=10
  $region2: #{_lambda_.3} parent=0 // loop_pre_header
    _
  $region3: #{_lambda_.3} parent=0 // loop_header
    %s10 = sphi 0, %s14
    %p11 = scmp.ge.s32.totalorder %s10, 10
    %s17 = sphi 0, %s29
    %s18 = sphi 0, %s25
    %s19 = sphi 0, %s17
    %s20 = sphi 0, %s18
    %s21 = sphi 0, %s19
    %s22 = sphi 0, %s20
    %s34 = sphi 0, %s36
    %s37 = sphi 0, %s34
    %s38 = sphi 0, %s37
    %s54 = sphi 0, %s38
    %s64 = sphi 0, %s66
    %s67 = sphi 0, %s64
    %s68 = sphi 0, %s67
    %s84 = sphi 0, %s68
    %s88 = sphi 0, %s88
    %s90 = sphi 0, %s88
    %s91 = sphi 0, %s90
    %s105 = sphi 0, %s91
    %s109 = sphi 0, %s109
    %s111 = sphi 0, %s109
    %s112 = sphi 0, %s111
    %s126 = sphi 0, %s112
    %s134 = sphi 0, %s136
    %s137 = sphi 0, %s134
    %s138 = sphi 0, %s137
    %s154 = sphi 0, %s138
  $region4: #{_lambda_.3} parent=0 // loop_header_branch
    %13 = sbr.rel (%p11) target = $region8
  $region5: #{_lambda_.3} parent=0 // loop_body
    %s15 = ssub.s32 %s10, 1
    %s16 = ssub.s32 %s10, 2
    %s23 = sadd.s32 1, %s18
    %p24 = scmp.ge.s32.totalorder %s23, 4
    %s25 = scalar_select %p24, 0, %s23
    %s26 = sadd.s32 1, %s17
    %s27 = scalar_select %p24, %s26, %s17
    %p28 = scmp.ge.s32.totalorder %s27, 2
    %s29 = scalar_select %p28, 0, %s27
    %s30 = ssub.s32 %s17, %s29
    %s31 = ssub.s32 %s18, %s25
    %s32 = sor.u32 %s30, %s31
    %p33 = scmp.eq.s32.totalorder %s32, 0
    %s35 = sadd.s32 %s34, 1
    %s36 = scalar_select %p33, %s34, %s35
    %p39 = pneg %p33
    %p40 = scmp.eq.s32.totalorder %s10, 7
    %p41 = por %p39, %p40
    %p42 = scmp.ne.s32.totalorder %s34, %s37
    %p43 = scmp.eq.s32.totalorder %s10, 0
    %p44 = por %p42, %p43
    %p45 = scmp.ne.s32.totalorder %s34, %s37
    %p46 = scmp.eq.s32.totalorder %s15, 7
    %p47 = por %p45, %p46
    %p48 = scmp.ne.s32.totalorder %s37, %s38
    %p49 = scmp.eq.s32.totalorder %s15, 0
    %p50 = por %p48, %p49
    %p51 = scmp.ne.s32.totalorder %s37, %s38
    %p52 = scmp.eq.s32.totalorder %s16, 7
    %p53 = por %p51, %p52
    %p55 = scmp.ne.s32.totalorder %s38, %s54
    %p56 = scmp.eq.s32.totalorder %s16, 0
    %p57 = por %p55, %p56
    %s58 = sadd.s32 %s18, 1
    %s59 = sadd.s32 %s25, 1
    %s60 = ssub.s32 %s17, %s29
    %s61 = ssub.s32 %s58, %s59
    %s62 = sor.u32 %s60, %s61
    %p63 = scmp.eq.s32.totalorder %s62, 0
    %s65 = sadd.s32 %s64, 1
    %s66 = scalar_select %p63, %s64, %s65
    %p69 = pneg %p63
    %p70 = scmp.eq.s32.totalorder %s10, 7
    %p71 = por %p69, %p70
    %p72 = scmp.ne.s32.totalorder %s64, %s67
    %p73 = scmp.eq.s32.totalorder %s10, 0
    %p74 = por %p72, %p73
    %p75 = scmp.ne.s32.totalorder %s64, %s67
    %p76 = scmp.eq.s32.totalorder %s15, 7
    %p77 = por %p75, %p76
    %p78 = scmp.ne.s32.totalorder %s67, %s68
    %p79 = scmp.eq.s32.totalorder %s15, 0
    %p80 = por %p78, %p79
    %p81 = scmp.ne.s32.totalorder %s67, %s68
    %p82 = scmp.eq.s32.totalorder %s16, 7
    %p83 = por %p81, %p82
    %p85 = scmp.ne.s32.totalorder %s68, %s84
    %p86 = scmp.eq.s32.totalorder %s16, 0
    %p87 = por %p85, %p86
    %s89 = sadd.s32 %s88, 1
    %p92 = scmp.eq.s32.totalorder %s10, 7
    %p93 = scmp.ne.s32.totalorder %s88, %s90
    %p94 = scmp.eq.s32.totalorder %s10, 0
    %p95 = por %p93, %p94
    %p96 = scmp.ne.s32.totalorder %s88, %s90
    %p97 = scmp.eq.s32.totalorder %s15, 7
    %p98 = por %p96, %p97
    %p99 = scmp.ne.s32.totalorder %s90, %s91
    %p100 = scmp.eq.s32.totalorder %s15, 0
    %p101 = por %p99, %p100
    %p102 = scmp.ne.s32.totalorder %s90, %s91
    %p103 = scmp.eq.s32.totalorder %s16, 7
    %p104 = por %p102, %p103
    %p106 = scmp.ne.s32.totalorder %s91, %s105
    %p107 = scmp.eq.s32.totalorder %s16, 0
    %p108 = por %p106, %p107
    %s110 = sadd.s32 %s109, 1
    %p113 = scmp.eq.s32.totalorder %s10, 7
    %p114 = scmp.ne.s32.totalorder %s109, %s111
    %p115 = scmp.eq.s32.totalorder %s10, 0
    %p116 = por %p114, %p115
    %p117 = scmp.ne.s32.totalorder %s109, %s111
    %p118 = scmp.eq.s32.totalorder %s15, 7
    %p119 = por %p117, %p118
    %p120 = scmp.ne.s32.totalorder %s111, %s112
    %p121 = scmp.eq.s32.totalorder %s15, 0
    %p122 = por %p120, %p121
    %p123 = scmp.ne.s32.totalorder %s111, %s112
    %p124 = scmp.eq.s32.totalorder %s16, 7
    %p125 = por %p123, %p124
    %p127 = scmp.ne.s32.totalorder %s112, %s126
    %p128 = scmp.eq.s32.totalorder %s16, 0
    %p129 = por %p127, %p128
    %s130 = ssub.s32 %s17, %s29
    %s131 = ssub.s32 %s18, %s25
    %s132 = sor.u32 %s130, %s131
    %p133 = scmp.eq.s32.totalorder %s132, 0
    %s135 = sadd.s32 %s134, 1
    %s136 = scalar_select %p133, %s134, %s135
    %p139 = pneg %p133
    %p140 = scmp.eq.s32.totalorder %s10, 7
    %p141 = por %p139, %p140
    %p142 = scmp.ne.s32.totalorder %s134, %s137
    %p143 = scmp.eq.s32.totalorder %s10, 0
    %p144 = por %p142, %p143
    %p145 = scmp.ne.s32.totalorder %s134, %s137
    %p146 = scmp.eq.s32.totalorder %s15, 7
    %p147 = por %p145, %p146
    %p148 = scmp.ne.s32.totalorder %s137, %s138
    %p149 = scmp.eq.s32.totalorder %s15, 0
    %p150 = por %p148, %p149
    %p151 = scmp.ne.s32.totalorder %s137, %s138
    %p152 = scmp.eq.s32.totalorder %s16, 7
    %p153 = por %p151, %p152
    %p155 = scmp.ne.s32.totalorder %s138, %s154
    %p156 = scmp.eq.s32.totalorder %s16, 0
    %p157 = por %p155, %p156
    %p158 = scmp.le.s32.totalorder 1, %s10
    %p159 = scmp.lt.s32.totalorder %s10, 9
    %p160 = pnand %p158, %p159
    %p161 = pneg %p160
    // Predicated region
    $region9: #{_lambda_.3} parent=5 // pred_check
      _
    $region10: #{_lambda_.3} parent=5 // pred_check_branch
      %163 = sbr.rel (%p160) target = $region12
    $region11: #{_lambda_.3} parent=5 // pred_region
      %s164 = ssub.s32 %s10, 1
      // Predicated region
      $region13: #{_lambda_.3} parent=11 // pred_check
        %p165 = pneg %p101
      $region14: #{_lambda_.3} parent=11 // pred_check_branch
        %167 = sbr.rel (%p165) target = $region16
      $region15: #{_lambda_.3} parent=11 // pred_region
        _
      $region16: #{_lambda_.3} parent=11 // pred_fallthru
        _
      // Predicated region
      $region17: #{_lambda_.3} parent=11 // pred_check
        %p168 = pneg %p122
      $region18: #{_lambda_.3} parent=11 // pred_check_branch
        %170 = sbr.rel (%p168) target = $region20
      $region19: #{_lambda_.3} parent=11 // pred_region
        _
      $region20: #{_lambda_.3} parent=11 // pred_fallthru
        _
    $region12: #{_lambda_.3} parent=5 // pred_fallthru
      _
    %p171 = scmp.lt.s32.totalorder %s10, 8
    // Predicated region
    $region21: #{_lambda_.3} parent=5 // pred_check
      %p172 = pneg %p171
    $region22: #{_lambda_.3} parent=5 // pred_check_branch
      %174 = sbr.rel (%p172) target = $region24
    $region23: #{_lambda_.3} parent=5 // pred_region
      // Predicated region
      $region25: #{_lambda_.3} parent=23 // pred_check
        %p175 = pneg %p44
      $region26: #{_lambda_.3} parent=23 // pred_check_branch
        %177 = sbr.rel (%p175) target = $region28
      $region27: #{_lambda_.3} parent=23 // pred_region
        %p178 = scmp.lt.s32.totalorder %s17, 1
        %s179 = scalar_select %p178, %s17, 1
        %p180 = scmp.lt.s32.totalorder %s18, 4
        %s181 = scalar_select %p180, %s18, 4
        %s182 = smul.addr %s181, 3
        %s183 = smul.addr %s179, 15
        %s184 = sadd.s32 %s182, %s183
        %s185 = smul.addr %s184, 4
        %s186 = scalar_lea.vmem %s0, %s185
      $region28: #{_lambda_.3} parent=23 // pred_fallthru
        _
      // Predicated region
      $region29: #{_lambda_.3} parent=23 // pred_check
        %p187 = pneg %p74
      $region30: #{_lambda_.3} parent=23 // pred_check_branch
        %189 = sbr.rel (%p187) target = $region32
      $region31: #{_lambda_.3} parent=23 // pred_region
        %s190 = sadd.s32 %s18, 1
        %p191 = scmp.lt.s32.totalorder %s17, 1
        %s192 = scalar_select %p191, %s17, 1
        %p193 = scmp.lt.s32.totalorder %s190, 4
        %s194 = scalar_select %p193, %s190, 4
        %s195 = smul.addr %s194, 3
        %s196 = smul.addr %s192, 15
        %s197 = sadd.s32 %s195, %s196
        %s198 = smul.addr %s197, 4
        %s199 = scalar_lea.vmem %s1, %s198
        %s200 = sadd.s32 %s18, 1
      $region32: #{_lambda_.3} parent=23 // pred_fallthru
        _
    $region24: #{_lambda_.3} parent=5 // pred_fallthru
      _
    %p201 = scmp.le.s32.totalorder 1, %s10
    %p202 = scmp.lt.s32.totalorder %s10, 9
    %p203 = pnand %p201, %p202
    %p204 = pneg %p203
    // Predicated region
    $region33: #{_lambda_.3} parent=5 // pred_check
      _
    $region34: #{_lambda_.3} parent=5 // pred_check_branch
      %206 = sbr.rel (%p203) target = $region36
    $region35: #{_lambda_.3} parent=5 // pred_region
      %s207 = ssub.s32 %s10, 1
      %p208 = scmp.lt.s32.totalorder %s19, 1
      %s209 = scalar_select %p208, %s19, 1
      %p210 = scmp.lt.s32.totalorder %s20, 4
      %s211 = scalar_select %p210, %s20, 4
      %s212 = smul.addr %s211, 3
      %s213 = smul.addr %s209, 15
      %s214 = sadd.s32 %s212, %s213
      %s215 = smul.addr %s214, 4
      %s216 = scalar_lea.vmem %s0, %s215
      %p217 = pneg %p50
      %p218 = pneg %p47
      %s219 = sadd.s32 %s20, 1
      %p220 = scmp.lt.s32.totalorder %s19, 1
      %s221 = scalar_select %p220, %s19, 1
      %p222 = scmp.lt.s32.totalorder %s219, 4
      %s223 = scalar_select %p222, %s219, 4
      %s224 = smul.addr %s223, 3
      %s225 = smul.addr %s221, 15
      %s226 = sadd.s32 %s224, %s225
      %s227 = smul.addr %s226, 4
      %s228 = scalar_lea.vmem %s1, %s227
      %p229 = pneg %p80
      %p230 = pneg %p77
      %p231 = pneg %p101
      %p232 = pneg %p98
      %p233 = pneg %p122
      %p234 = pneg %p119
      %p235 = pneg %p150
      %p236 = pneg %p147
      %p237 = scmp.lt.s32.totalorder %s19, 1
      %s238 = scalar_select %p237, %s19, 1
      %p239 = scmp.lt.s32.totalorder %s20, 3
      %s240 = scalar_select %p239, %s20, 3
      %s241 = smul.addr %s240, 6
      %s242 = smul.addr %s238, 24
      %s243 = sadd.s32 %s241, %s242
      %s244 = smul.addr %s243, 4
      %s245 = scalar_lea.vmem %s4, %s244
      %p246 = scmp.lt.s32.totalorder %s19, 1
      %s247 = scalar_select %p246, %s19, 1
      %p248 = scmp.lt.s32.totalorder %s20, 4
      %s249 = scalar_select %p248, %s20, 4
      %s250 = smul.addr %s249, 3
      %s251 = smul.addr %s247, 15
      %s252 = sadd.s32 %s250, %s251
      %s253 = smul.addr %s252, 4
      %s254 = scalar_lea.vmem %s0, %s253
      %s255 = sadd.s32 %s20, 1
      %p256 = scmp.lt.s32.totalorder %s19, 1
      %s257 = scalar_select %p256, %s19, 1
      %p258 = scmp.lt.s32.totalorder %s255, 4
      %s259 = scalar_select %p258, %s255, 4
      %s260 = smul.addr %s259, 3
      %s261 = smul.addr %s257, 15
      %s262 = sadd.s32 %s260, %s261
      %s263 = smul.addr %s262, 4
      %s264 = scalar_lea.vmem %s1, %s263
      %s265 = sadd.s32 %s20, 1
      %p266 = scmp.lt.s32.totalorder %s19, 1
      %s267 = scalar_select %p266, %s19, 1
      %p268 = scmp.lt.s32.totalorder %s20, 3
      %s269 = scalar_select %p268, %s20, 3
      %s270 = smul.addr %s269, 6
      %s271 = smul.addr %s267, 24
      %s272 = sadd.s32 %s270, %s271
      %s273 = smul.addr %s272, 4
      %s274 = scalar_lea.vmem %s4, %s273
      %v276 = vld [vmem:[%s254] sm:$0xff]
      %v277 = vld [vmem:[%s254 + $0x8] sm:$0xf]
      %278 = vst [vmem:[#allocation2] sm:$0xff] %v276
      %vm279 = vcmask 125952
      %280 = vst.msk [vmem:[#allocation2 + $0x8] sm:$0xf] %vm279, %v277
      %v281 = vld [vmem:[%s254] sm:$0xff]
      %v282 = vld [vmem:[%s254 + $0x8] sm:$0xf]
      %285 = vrot.lane.b32.xlu0 %v281, 127
      %v286 = vpop.permute.xlu0 %285
      %287 = vrot.lane.b32.xlu0 %v282, 127
      %v288 = vpop.permute.xlu0 %287
      %v289 = vrot.slane %v286, 4
      %v290 = vrot.slane %v288, 4
      %vm291 = vcmask 1043456
      %v292 = vsel %vm291, %v289, %v290
      %vm293 = vcmask 1039360
      %v294 = vsel %vm293, %v286, %v292
      %297 = vst [vmem:[#allocation2 + $0xc] sm:$0xff] %v294
      %vm298 = vcmask 117760
      %299 = vst.msk [vmem:[#allocation2 + $0x14] sm:$0xf] %vm298, %v288
      %v300 = vld [vmem:[%s264] sm:$0xf]
      %302 = vrot.lane.b32.xlu0 %v300, 15
      %v303 = vpop.permute.xlu0 %302
      %vm305 = vcmask 126072
      %306 = vst.msk [vmem:[#allocation2 + $0x14] sm:$0xf] %vm305, %v303
      %v307 = vld [vmem:[%s254] sm:$0xff]
      %v308 = vld [vmem:[%s254 + $0x8] sm:$0xf]
      %311 = vrot.lane.b32.xlu0 %v307, 126
      %v312 = vpop.permute.xlu0 %311
      %313 = vrot.lane.b32.xlu0 %v308, 126
      %v314 = vpop.permute.xlu0 %313
      %v315 = vrot.slane %v312, 4
      %v316 = vrot.slane %v314, 4
      %v317 = vsel %vm291, %v315, %v316
      %vm318 = vcmask 1031168
      %v319 = vsel %vm318, %v312, %v317
      %322 = vst [vmem:[#allocation2 + $0x18] sm:$0xff] %v319
      %vm323 = vcmask 109568
      %324 = vst.msk [vmem:[#allocation2 + $0x20] sm:$0xf] %vm323, %v314
      %v325 = vld [vmem:[%s264] sm:$0xf]
      %327 = vrot.lane.b32.xlu0 %v325, 14
      %v328 = vpop.permute.xlu0 %327
      %vm330 = vcmask 126064
      %331 = vst.msk [vmem:[#allocation2 + $0x20] sm:$0xf] %vm330, %v328
      %v332 = vld [vmem:[%s254] sm:$0xff]
      %v333 = vld [vmem:[%s254 + $0x8] sm:$0xf]
      %336 = vrot.lane.b32.xlu0 %v332, 94
      %v337 = vpop.permute.xlu0 %336
      %338 = vrot.lane.b32.xlu0 %v333, 94
      %v339 = vpop.permute.xlu0 %338
      %v340 = vrot.slane %v337, 4
      %v341 = vrot.slane %v339, 4
      %v342 = vsel %vm291, %v340, %v341
      %vm343 = vcmask 769024
      %v344 = vsel %vm343, %v337, %v342
      %vm346 = vcmask 1043456
      %vm347 = vcmask 900100
      %vm348 = vmor %vm347, %vm346
      %349 = vst.msk [vmem:[#allocation2 + $0x24] sm:$0xff] %vm348, %v344
      %v350 = vld [vmem:[%s264] sm:$0xf]
      %352 = vrot.lane.b32.xlu0 %v350, 110
      %v353 = vpop.permute.xlu0 %352
      %v354 = vrot.slane %v353, 4
      %vm355 = vcmask 900096
      %v356 = vsel %vm355, %v354, %v353
      %vm358 = vcmask 1044336
      %vm359 = vcmask 130052
      %vm360 = vmor %vm359, %vm358
      %361 = vst.msk [vmem:[#allocation2 + $0x28] sm:$0xff] %vm360, %v356
      %v362 = vld [vmem:[%s254] sm:$0xff]
      %v363 = vld [vmem:[%s254 + $0x8] sm:$0xf]
      %366 = vrot.lane.b32.xlu0 %v362, 93
      %v367 = vpop.permute.xlu0 %366
      %368 = vrot.lane.b32.xlu0 %v363, 93
      %v369 = vpop.permute.xlu0 %368
      %v370 = vrot.slane %v367, 4
      %v371 = vrot.slane %v369, 4
      %v372 = vsel %vm291, %v370, %v371
      %vm373 = vcmask 760832
      %v374 = vsel %vm373, %v367, %v372
      %vm376 = vcmask 891908
      %vm377 = vmor %vm376, %vm346
      %378 = vst.msk [vmem:[#allocation2 + $0x30] sm:$0xff] %vm377, %v374
      %v379 = vld [vmem:[%s264] sm:$0xf]
      %381 = vrot.lane.b32.xlu0 %v379, 109
      %v382 = vpop.permute.xlu0 %381
      %v383 = vrot.slane %v382, 4
      %vm384 = vcmask 891904
      %v385 = vsel %vm384, %v383, %v382
      %vm387 = vcmask 1044328
      %vm388 = vmor %vm359, %vm387
      %389 = vst.msk [vmem:[#allocation2 + $0x34] sm:$0xff] %vm388, %v385
      %v390 = vld [vmem:[%s254] sm:$0xff]
      %v391 = vld [vmem:[%s254 + $0x8] sm:$0xf]
      %394 = vrot.lane.b32.xlu0 %v390, 92
      %v395 = vpop.permute.xlu0 %394
      %396 = vrot.lane.b32.xlu0 %v391, 92
      %v397 = vpop.permute.xlu0 %396
      %v398 = vrot.slane %v395, 4
      %v399 = vrot.slane %v397, 4
      %v400 = vsel %vm291, %v398, %v399
      %vm401 = vcmask 752640
      %v402 = vsel %vm401, %v395, %v400
      %vm404 = vcmask 883716
      %vm405 = vmor %vm404, %vm346
      %406 = vst.msk [vmem:[#allocation2 + $0x3c] sm:$0xff] %vm405, %v402
      %v407 = vld [vmem:[%s264] sm:$0xf]
      %409 = vrot.lane.b32.xlu0 %v407, 108
      %v410 = vpop.permute.xlu0 %409
      %v411 = vrot.slane %v410, 4
      %vm412 = vcmask 883712
      %v413 = vsel %vm412, %v411, %v410
      %vm415 = vcmask 1044320
      %vm416 = vmor %vm359, %vm415
      %417 = vst.msk [vmem:[#allocation2 + $0x40] sm:$0xff] %vm416, %v413
      %v418 = vld [vmem:[%s254] sm:$0xff]
      %v419 = vld [vmem:[%s254 + $0x8] sm:$0xf]
      %422 = vrot.lane.b32.xlu0 %v418, 60
      %v423 = vpop.permute.xlu0 %422
      %424 = vrot.lane.b32.xlu0 %v419, 60
      %v425 = vpop.permute.xlu0 %424
      %v426 = vrot.slane %v423, 4
      %v427 = vrot.slane %v425, 4
      %v428 = vsel %vm291, %v426, %v427
      %vm429 = vcmask 490496
      %v430 = vsel %vm429, %v423, %v428
      %vm432 = vcmask 621572
      %vm433 = vmor %vm432, %vm346
      %434 = vst.msk [vmem:[#allocation2 + $0x48] sm:$0xff] %vm433, %v430
      %v435 = vld [vmem:[%s264] sm:$0xf]
      %437 = vrot.lane.b32.xlu0 %v435, 76
      %v438 = vpop.permute.xlu0 %437
      %v439 = vrot.slane %v438, 4
      %vm440 = vcmask 621568
      %v441 = vsel %vm440, %v439, %v438
      %vm443 = vcmask 1044064
      %vm444 = vmor %vm359, %vm443
      %445 = vst.msk [vmem:[#allocation2 + $0x4c] sm:$0xff] %vm444, %v441
      %v446 = vld [vmem:[%s254] sm:$0xff]
      %v447 = vld [vmem:[%s254 + $0x8] sm:$0xf]
      %450 = vrot.lane.b32.xlu0 %v446, 59
      %v451 = vpop.permute.xlu0 %450
      %452 = vrot.lane.b32.xlu0 %v447, 59
      %v453 = vpop.permute.xlu0 %452
      %v454 = vrot.slane %v451, 4
      %v455 = vrot.slane %v453, 4
      %v456 = vsel %vm291, %v454, %v455
      %vm457 = vcmask 482304
      %v458 = vsel %vm457, %v451, %v456
      %vm460 = vcmask 613380
      %vm461 = vmor %vm460, %vm346
      %462 = vst.msk [vmem:[#allocation2 + $0x54] sm:$0xff] %vm461, %v458
      %v463 = vld [vmem:[%s264] sm:$0xf]
      %465 = vrot.lane.b32.xlu0 %v463, 75
      %v466 = vpop.permute.xlu0 %465
      %v467 = vrot.slane %v466, 4
      %vm468 = vcmask 613376
      %v469 = vsel %vm468, %v467, %v466
      %vm471 = vcmask 1044056
      %vm472 = vmor %vm359, %vm471
      %473 = vst.msk [vmem:[#allocation2 + $0x58] sm:$0xff] %vm472, %v469
      %v474 = vld [vmem:[%s254] sm:$0xff]
      %v475 = vld [vmem:[%s254 + $0x8] sm:$0xf]
      %478 = vrot.lane.b32.xlu0 %v474, 58
      %v479 = vpop.permute.xlu0 %478
      %480 = vrot.lane.b32.xlu0 %v475, 58
      %v481 = vpop.permute.xlu0 %480
      %v482 = vrot.slane %v479, 4
      %v483 = vrot.slane %v481, 4
      %v484 = vsel %vm291, %v482, %v483
      %vm485 = vcmask 474112
      %v486 = vsel %vm485, %v479, %v484
      %vm488 = vcmask 605188
      %vm489 = vmor %vm488, %vm346
      %490 = vst.msk [vmem:[#allocation2 + $0x60] sm:$0xff] %vm489, %v486
      %v491 = vld [vmem:[%s264] sm:$0xf]
      %493 = vrot.lane.b32.xlu0 %v491, 74
      %v494 = vpop.permute.xlu0 %493
      %v495 = vrot.slane %v494, 4
      %vm496 = vcmask 605184
      %v497 = vsel %vm496, %v495, %v494
      %vm499 = vcmask 1044048
      %vm500 = vmor %vm359, %vm499
      %501 = vst.msk [vmem:[#allocation2 + $0x64] sm:$0xff] %vm500, %v497
      %v502 = vld [vmem:[%s2] sm:$0xf]
      %v503 = vld [vmem:[%s2 + $0x4] sm:$0xf]
      %v504 = vld [vmem:[#allocation2] sm:$0xff]
      %v505 = vld [vmem:[#allocation2 + $0x8] sm:$0xf]
      %v506 = vld [vmem:[#allocation2 + $0xc] sm:$0xff]
      %v507 = vld [vmem:[#allocation2 + $0x14] sm:$0xf]
      %v508 = vld [vmem:[#allocation2 + $0x18] sm:$0xff]
      %v509 = vld [vmem:[#allocation2 + $0x20] sm:$0xf]
      %v510 = vld [vmem:[#allocation2 + $0x24] sm:$0xff]
      %v511 = vld [vmem:[#allocation2 + $0x2c] sm:$0xf]
      %v512 = vld [vmem:[#allocation2 + $0x30] sm:$0xff]
      %v513 = vld [vmem:[#allocation2 + $0x38] sm:$0xf]
      %v514 = vld [vmem:[#allocation2 + $0x3c] sm:$0xff]
      %v515 = vld [vmem:[#allocation2 + $0x44] sm:$0xf]
      %v516 = vld [vmem:[#allocation2 + $0x48] sm:$0xff]
      %v517 = vld [vmem:[#allocation2 + $0x50] sm:$0xf]
      %v518 = vld [vmem:[#allocation2 + $0x54] sm:$0xff]
      %v519 = vld [vmem:[#allocation2 + $0x5c] sm:$0xf]
      %v520 = vld [vmem:[#allocation2 + $0x60] sm:$0xff]
      %v521 = vld [vmem:[#allocation2 + $0x68] sm:$0xf]
      %v522 = vld [vmem:[%s3] sm:$0xff]
      %v523 = vld [vmem:[%s3 + $0x8] sm:$0xff]
      %525 = vset.pattern.permute.xlu0 0
      %526 = vperm.xlu0 %525, %v522
      %v527 = vpop.permute.xlu0 %526
      %530 = vset.pattern.permute.xlu0 0
      %531 = vperm.xlu0 %530, %v523
      %v532 = vpop.permute.xlu0 %531
      %v536 = vunpack.c.l.b16 %v502
      %v537 = vunpack.c.l.b16 %v503
      %v538 = vpack.c.b16 %v537, %v536
      %v557 = vunpack.c.l.b16 %v504
      %v558 = vunpack.c.h.b16 %v504
      %v559 = vunpack.c.l.b16 %v505
      %v560 = vunpack.c.l.b16 %v506
      %v561 = vunpack.c.h.b16 %v506
      %v562 = vunpack.c.l.b16 %v507
      %v563 = vunpack.c.l.b16 %v508
      %v564 = vunpack.c.h.b16 %v508
      %v565 = vunpack.c.l.b16 %v509
      %v566 = vunpack.c.l.b16 %v510
      %v567 = vunpack.c.h.b16 %v510
      %v568 = vunpack.c.l.b16 %v511
      %v569 = vunpack.c.l.b16 %v512
      %v570 = vunpack.c.h.b16 %v512
      %v571 = vunpack.c.l.b16 %v513
      %v572 = vunpack.c.l.b16 %v514
      %v573 = vunpack.c.h.b16 %v514
      %v574 = vunpack.c.l.b16 %v515
      %v575 = vunpack.c.l.b16 %v516
      %v576 = vunpack.c.h.b16 %v516
      %v577 = vunpack.c.l.b16 %v517
      %v578 = vunpack.c.l.b16 %v518
      %v579 = vunpack.c.h.b16 %v518
      %v580 = vunpack.c.l.b16 %v519
      %v581 = vunpack.c.l.b16 %v520
      %v582 = vunpack.c.h.b16 %v520
      %v583 = vunpack.c.l.b16 %v521
      %v584 = vpack.c.b16 %v560, %v557
      %v585 = vpack.c.b16 %v561, %v558
      %v586 = vpack.c.b16 %v562, %v559
      %v587 = vpack.c.b16 %v566, %v563
      %v588 = vpack.c.b16 %v567, %v564
      %v589 = vpack.c.b16 %v568, %v565
      %v590 = vpack.c.b16 %v572, %v569
      %v591 = vpack.c.b16 %v573, %v570
      %v592 = vpack.c.b16 %v574, %v571
      %v593 = vpack.c.b16 %v578, %v575
      %v594 = vpack.c.b16 %v579, %v576
      %v595 = vpack.c.b16 %v580, %v577
      %v596 = vpack.c.b16 %v581, %v581
      %v597 = vpack.c.b16 %v582, %v582
      %v598 = vpack.c.b16 %v583, %v583
      %vm611 = vcmask 588800
      %v613 = vsel %vm611, %v538, 0
      %v616 = vsel %vm346, %v596, 0
      %v619 = vsel %vm346, %v597, 0
      %v622 = vsel %vm346, %v598, 0
      %624 = vmatprep.subr.bf16.mxu0 0
      %625 = vmatpush1.bf16.msra.mxu0 0
      %626 = vmatprep.subr.bf16.mxu0 0
      %627 = vmatpush1.bf16.msra.mxu0 0
      %628 = vmatprep.subr.bf16.mxu0 0
      %629 = vmatpush1.bf16.msra.mxu0 0
      %630 = vmatprep.subr.bf16.mxu0 %v619
      %631 = vmatpush1.bf16.msra.mxu0 %v616
      %632 = vmatprep.subr.bf16.mxu0 %v594
      %633 = vmatpush1.bf16.msra.mxu0 %v593
      %634 = vmatprep.subr.bf16.mxu0 %v591
      %635 = vmatpush1.bf16.msra.mxu0 %v590
      %636 = vmatprep.subr.bf16.mxu0 %v588
      %637 = vmatpush1.bf16.msra.mxu0 %v587
      %638 = vmatprep.subr.bf16.mxu0 %v585
      %639 = vmatpush1.bf16.msra.mxu0 %v584
      %640 = vmatprep.subr.bf16.mxu0 0
      %641 = vmatpush2.bf16.msra.mxu0 0
      %642 = vmatprep.subr.bf16.mxu0 0
      %643 = vmatpush2.bf16.msra.mxu0 0
      %644 = vmatprep.subr.bf16.mxu0 0
      %645 = vmatpush2.bf16.msra.mxu0 0
      %646 = vmatprep.subr.bf16.mxu0 0
      %647 = vmatpush2.bf16.msra.mxu0 0
      %648 = vmatprep.subr.bf16.mxu0 0
      %649 = vmatpush2.bf16.msra.mxu0 0
      %650 = vmatprep.subr.bf16.mxu0 0
      %651 = vmatpush2.bf16.msra.mxu0 0
      %652 = vmatprep.subr.bf16.mxu0 0
      %653 = vmatpush2.bf16.msra.mxu0 0
      %654 = vmatprep.subr.bf16.mxu0 0
      %655 = vmatpush2.bf16.msra.mxu0 0
      %656 = vmatprep.mubr.bf16.mxu0 0
      %657 = vmatmul.mubr.bf16.gmra.mxu0 %v613
      %v658 = vpop.f32.mrf.mxu0
      %v659 = vadd.f32 %v527, %v658
      %v660 = vpop.f32.mrf.mxu0
      %v661 = vadd.f32 %v527, %v660
      %v662 = vpop.f32.mrf.mxu0
      %v663 = vadd.f32 %v532, %v662
      %v664 = vpop.f32.mrf.mxu0
      %v665 = vadd.f32 %v532, %v664
      %666 = vdwg.mxu0
      %667 = vmatprep.subr.bf16.mxu0 0
      %668 = vmatpush1.bf16.msra.mxu0 0
      %669 = vmatprep.subr.bf16.mxu0 0
      %670 = vmatpush1.bf16.msra.mxu0 0
      %671 = vmatprep.subr.bf16.mxu0 0
      %672 = vmatpush1.bf16.msra.mxu0 0
      %673 = vmatprep.subr.bf16.mxu0 0
      %674 = vmatpush1.bf16.msra.mxu0 %v622
      %675 = vmatprep.subr.bf16.mxu0 0
      %676 = vmatpush1.bf16.msra.mxu0 %v595
      %677 = vmatprep.subr.bf16.mxu0 0
      %678 = vmatpush1.bf16.msra.mxu0 %v592
      %679 = vmatprep.subr.bf16.mxu0 0
      %680 = vmatpush1.bf16.msra.mxu0 %v589
      %681 = vmatprep.subr.bf16.mxu0 0
      %682 = vmatpush1.bf16.msra.mxu0 %v586
      %683 = vmatprep.subr.bf16.mxu0 0
      %684 = vmatpush2.bf16.msra.mxu0 0
      %685 = vmatprep.subr.bf16.mxu0 0
      %686 = vmatpush2.bf16.msra.mxu0 0
      %687 = vmatprep.subr.bf16.mxu0 0
      %688 = vmatpush2.bf16.msra.mxu0 0
      %689 = vmatprep.subr.bf16.mxu0 0
      %690 = vmatpush2.bf16.msra.mxu0 0
      %691 = vmatprep.subr.bf16.mxu0 0
      %692 = vmatpush2.bf16.msra.mxu0 0
      %693 = vmatprep.subr.bf16.mxu0 0
      %694 = vmatpush2.bf16.msra.mxu0 0
      %695 = vmatprep.subr.bf16.mxu0 0
      %696 = vmatpush2.bf16.msra.mxu0 0
      %697 = vmatprep.subr.bf16.mxu0 0
      %698 = vmatpush2.bf16.msra.mxu0 0
      %699 = vmatprep.mubr.bf16.mxu0 0
      %700 = vmatmul.mubr.bf16.gmra.mxu0 %v613
      %v701 = vpop.f32.mrf.mxu0
      %v702 = vadd.f32 %v527, %v701
      %v703 = vpop.f32.mrf.mxu0
      %v704 = vpop.f32.mrf.mxu0
      %v705 = vadd.f32 %v532, %v704
      %v706 = vpop.f32.mrf.mxu0
      %707 = vdwg.mxu0
      %v708 = vmax.f32 %v659, 0.0
      %v709 = vmax.f32 %v661, 0.0
      %v710 = vmax.f32 %v702, 0.0
      %v711 = vmax.f32 %v663, 0.0
      %v712 = vmax.f32 %v665, 0.0
      %v713 = vmax.f32 %v705, 0.0
      %v714 = vpack.c.bf16 %v711, %v708
      %v715 = vpack.c.bf16 %v712, %v709
      %v716 = vpack.c.bf16 %v713, %v710
      %v720 = vunpack.c.l.b16 %v714
      %v721 = vunpack.c.l.b16 %v715
      %v722 = vunpack.c.l.b16 %v716
      %v723 = vunpack.c.h.b16 %v714
      %v724 = vunpack.c.h.b16 %v715
      %v725 = vunpack.c.h.b16 %v716
      %v726 = vpack.c.b16 %v721, %v720
      %v727 = vpack.c.b16 %v722, %v722
      %v728 = vpack.c.b16 %v724, %v723
      %v729 = vpack.c.b16 %v725, %v725
      %734 = vst [vmem:[%s274] sm:$0xff] %v726
      %735 = vst.msk [vmem:[%s274 + $0x8] sm:$0xf] %vm279, %v727
      %736 = vst [vmem:[%s274 + $0xc] sm:$0xff] %v728
      %737 = vst.msk [vmem:[%s274 + $0x14] sm:$0xf] %vm279, %v729
      %p738 = scmp.lt.s32.totalorder %s19, 1
      %s739 = scalar_select %p738, %s19, 1
      %p740 = scmp.lt.s32.totalorder %s20, 3
      %s741 = scalar_select %p740, %s20, 3
      %s742 = smul.addr %s741, 6
      %s743 = smul.addr %s739, 24
      %s744 = sadd.s32 %s742, %s743
      %s745 = smul.addr %s744, 4
      %s746 = scalar_lea.vmem %s4, %s745
      // Predicated region
      $region37: #{_lambda_.3} parent=35 // pred_check
        %p747 = pneg %p147
      $region38: #{_lambda_.3} parent=35 // pred_check_branch
        %749 = sbr.rel (%p747) target = $region40
      $region39: #{_lambda_.3} parent=35 // pred_region
        _
      $region40: #{_lambda_.3} parent=35 // pred_fallthru
        _
    $region36: #{_lambda_.3} parent=5 // pred_fallthru
      _
    %p750 = scmp.le.s32.totalorder 2, %s10
    // Predicated region
    $region41: #{_lambda_.3} parent=5 // pred_check
      %p751 = pneg %p750
    $region42: #{_lambda_.3} parent=5 // pred_check_branch
      %753 = sbr.rel (%p751) target = $region44
    $region43: #{_lambda_.3} parent=5 // pred_region
      %s754 = ssub.s32 %s10, 2
      // Predicated region
      $region45: #{_lambda_.3} parent=43 // pred_check
        %p755 = pneg %p153
      $region46: #{_lambda_.3} parent=43 // pred_check_branch
        %757 = sbr.rel (%p755) target = $region48
      $region47: #{_lambda_.3} parent=43 // pred_region
        %p758 = scmp.lt.s32.totalorder %s21, 1
        %s759 = scalar_select %p758, %s21, 1
        %p760 = scmp.lt.s32.totalorder %s22, 3
        %s761 = scalar_select %p760, %s22, 3
        %s762 = smul.addr %s761, 6
        %s763 = smul.addr %s759, 24
        %s764 = sadd.s32 %s762, %s763
        %s765 = smul.addr %s764, 4
        %s766 = scalar_lea.vmem %s4, %s765
      $region48: #{_lambda_.3} parent=43 // pred_fallthru
        _
    $region44: #{_lambda_.3} parent=5 // pred_fallthru
      _
  $region6: #{_lambda_.3} parent=0 // loop_footer
    %s14 = sadd.s32 1, %s10
  $region7: #{_lambda_.3} parent=0 // loop_footer_branch
    %9 = sbr.rel target = $region3
  $region8: #{_lambda_.3} parent=0 // loop_exit
    _

</llo_original>
